<compile_context>
chip_gen: v5e
topology: v5e:2x2
jax: 0.10.0
libtpu: 0.0.40
codegen_flags: <defaults>
</compile_context>

<pallas_src>
import jax
import jax.numpy as jnp
import numpy as np
from jax.experimental import pallas as pl
from jax.experimental.pallas import tpu as pltpu

B = 4              # number of graphs per call (batch)
N = 16             # nodes per graph
IN_DIMS = 8        # in_dims
OUT_DIMS = 8       # out_dims
HEADS = 4          # num_heads
HID = HEADS * OUT_DIMS
NEG_SLOPE = 0.2    # GATConv default LeakyReLU slope
E = 40             # edges per graph
NEG_INF = -1e30

# All graphs in one grid step (best on single-TC v5e/v6e).  On v7x use B // 2
# so both TensorCores get one "parallel" step each.
GRAPHS_PER_BLOCK = B


def gat_kernel(x_ref, adj_bias_ref, proj_ref, att_ref, lin_ref, out_ref):
    g = x_ref.shape[0]                              # graphs in this block (static)

    proj = proj_ref[...]                            # [F+1, H*D]  (w_gat ; b_gat)
    w_p, b_p = proj[:IN_DIMS], proj[IN_DIMS:]
    lin = lin_ref[...]                              # [H*D+1, OUT]  (w_l ; b_l)
    w_l, b_l = lin[:HID], lin[HID:]

    # ---- projection: one 2-D MXU matmul for all graphs / heads -------------
    x2 = x_ref[...].reshape(g * N, IN_DIMS)                              # [gN, F]
    xp = jnp.dot(x2, w_p, preferred_element_type=jnp.float32)            # [gN, H*D]

    # ---- attention logits: one matmul against the block-diag att matrix ----
    # a[:, h]   = <xp_h, att_dst_h>   (dst logit),  a[:, H+h] = src logit.
    a = jnp.dot(xp, att_ref[...], preferred_element_type=jnp.float32)    # [gN, 2H]
    a_t = jnp.transpose(a.reshape(g, N, 2 * HEADS), (0, 2, 1))           # [g, 2H, N]
    a_dst = a_t[:, :HEADS, :]                                            # [g, H, N]
    a_src = a_t[:, HEADS:, :]                                            # [g, H, N]

    # scores[g, h, i, j] = a_dst[g, h, i] + a_src[g, h, j]
    scores = a_dst[:, :, :, None] + a_src[:, :, None, :]                 # [g, H, N, N]
    scores = jnp.where(scores >= 0.0, scores, NEG_SLOPE * scores)        # LeakyReLU
    scores = scores + adj_bias_ref[...][:, None, :, :]                   # additive edge mask

    # ---- masked softmax over source nodes, graphs+heads folded together ----
    # Self loops guarantee one unmasked entry per row, so the denominator is
    # >= 1 and masked entries underflow to exactly 0 after exp.
    s = scores.reshape(g * HEADS, N, N)
    m = jnp.max(s, axis=-1, keepdims=True)
    e = jnp.exp(s - m)
    denom = jnp.sum(e, axis=-1, keepdims=True)
    alpha = e * pl.reciprocal(denom, approx=True)                        # [g*H, N, N]

    # ---- neighbour aggregation: one batched contraction over g*H -----------
    xp3 = xp.reshape(g, N, HID)
    xph = jnp.stack([xp3[:, :, h * OUT_DIMS:(h + 1) * OUT_DIMS]
                     for h in range(HEADS)], axis=1)                     # [g, H, N, D]
    agg = jnp.einsum('bij,bjd->bid', alpha,
                     xph.reshape(g * HEADS, N, OUT_DIMS),
                     preferred_element_type=jnp.float32)                 # [g*H, N, D]

    # back to concat-head layout, + GAT bias, ReLU
    agg4 = agg.reshape(g, HEADS, N, OUT_DIMS)
    act = jnp.concatenate([agg4[:, h] for h in range(HEADS)], axis=-1)   # [g, N, H*D]
    act = jnp.maximum(act.reshape(g * N, HID) + b_p, 0.0)
    # TODO(synk): F.dropout(p=0.1, training=True) is stochastic; treated as identity (eval).

    # ---- final Linear: single [g*N, H*D] @ [H*D, OUT] matmul ----------------
    out = jnp.dot(act, w_l, preferred_element_type=jnp.float32) + b_l    # [g*N, OUT]
    out_ref[...] = out.reshape(g, N, OUT_DIMS)


def pack_params(w_gat, b_gat, att_src, att_dst, w_l, b_l):
    """Pack the six tiny parameter tensors into three kernel inputs (done once)."""
    proj = jnp.concatenate([w_gat, b_gat.reshape(1, HID)], axis=0)        # [F+1, H*D]
    eye = jnp.eye(HEADS, dtype=jnp.float32)
    dst_blk = (att_dst[:, :, None] * eye[:, None, :]).reshape(HID, HEADS)  # block-diag
    src_blk = (att_src[:, :, None] * eye[:, None, :]).reshape(HID, HEADS)
    att_mat = jnp.concatenate([dst_blk, src_blk], axis=1)                 # [H*D, 2H]
    lin = jnp.concatenate([w_l, b_l.reshape(1, OUT_DIMS)], axis=0)        # [H*D+1, OUT]
    return proj, att_mat, lin


@jax.jit
def gat_forward(x, adj, proj, att_mat, lin):
    """x: [B, N, F]; adj: [B, N, N] with adj[b, i, j] = 1 iff edge j -> i (+self loops)."""
    bsz = x.shape[0]
    gpb = GRAPHS_PER_BLOCK
    # Additive attention mask: 0 on edges, -1e30 elsewhere.
    adj_bias = jnp.where(adj > 0.0, 0.0, NEG_INF).astype(jnp.float32)

    return pl.pallas_call(
        gat_kernel,
        out_shape=jax.ShapeDtypeStruct((bsz, N, OUT_DIMS), jnp.float32),
        grid=(bsz // gpb,),
        in_specs=[
            pl.BlockSpec((gpb, N, IN_DIMS), lambda i: (i, 0, 0)),         # x
            pl.BlockSpec((gpb, N, N), lambda i: (i, 0, 0)),               # adj additive bias
            pl.BlockSpec((IN_DIMS + 1, HID), lambda i: (0, 0)),           # w_gat ; b_gat
            pl.BlockSpec((HID, 2 * HEADS), lambda i: (0, 0)),             # att (block-diag)
            pl.BlockSpec((HID + 1, OUT_DIMS), lambda i: (0, 0)),          # w_l ; b_l
        ],
        out_specs=pl.BlockSpec((gpb, N, OUT_DIMS), lambda i: (i, 0, 0)),
        compiler_params=pltpu.CompilerParams(
            dimension_semantics=("parallel",)),
    )(x, adj_bias, proj, att_mat, lin)


def reference(x, adj, w_gat, b_gat, att_src, att_dst, w_l, b_l):
    """Pure-JAX reference (same dense-GAT math), vmapped over the batch."""
    def one_graph(xb, adjb):
        xp = xb @ w_gat
        mask = adjb > 0.0
        outs = []
        for h in range(HEADS):
            xp_h = xp[:, h * OUT_DIMS:(h + 1) * OUT_DIMS]
            a_dst = (xp_h * att_dst[h]).sum(1, keepdims=True)
            a_src = (xp_h * att_src[h]).sum(1, keepdims=True)
            s = a_dst + a_src.T
            s = jnp.where(s >= 0.0, s, NEG_SLOPE * s)
            s = jnp.where(mask, s, NEG_INF)
            e = jnp.exp(s - s.max(1, keepdims=True)) * mask
            alpha = e / jnp.maximum(e.sum(1, keepdims=True), 1e-16)
            outs.append(alpha @ xp_h)
        g = jnp.concatenate(outs, axis=1) + b_gat
        a = jnp.maximum(g, 0.0)
        return a @ w_l + b_l
    return jax.vmap(one_graph)(x, adj)


if __name__ == "__main__":
    key = jax.random.PRNGKey(0)
    keys = jax.random.split(key, 10)

    # Batched inputs (B independent small graphs).
    x = jax.random.normal(keys[0], (B, N, IN_DIMS), jnp.float32)
    src = jax.random.randint(keys[1], (B, E), 0, N)
    dst = jax.random.randint(keys[2], (B, E), 0, N)
    edge_weights = jax.random.uniform(keys[3], (B, E))   # ignored (no edge_dim in GATConv)

    # Parameters (shapes from GATConv(in, out, heads) + Linear(out*heads, out)).
    w_gat = 0.1 * jax.random.normal(keys[4], (IN_DIMS, HID), jnp.float32)
    b_gat = 0.1 * jax.random.normal(keys[5], (1, HID), jnp.float32)
    att_src = 0.1 * jax.random.normal(keys[6], (HEADS, OUT_DIMS), jnp.float32)
    att_dst = 0.1 * jax.random.normal(keys[7], (HEADS, OUT_DIMS), jnp.float32)
    w_l = 0.1 * jax.random.normal(keys[8], (HID, OUT_DIMS), jnp.float32)
    b_l = 0.1 * jax.random.normal(keys[9], (1, OUT_DIMS), jnp.float32)

    # Dense adjacency: adj[b, i, j] = 1 iff edge j -> i, plus self loops
    # (GATConv default add_self_loops=True).
    bidx = jnp.arange(B)[:, None]
    adj = jnp.zeros((B, N, N), jnp.float32).at[bidx, dst, src].set(1.0)
    diag = jnp.arange(N)
    adj = adj.at[:, diag, diag].set(1.0)

    # Parameter repack done once, outside the per-call path.
    proj, att_mat, lin = pack_params(w_gat, b_gat, att_src, att_dst, w_l, b_l)

    out = jax.block_until_ready(gat_forward(x, adj, proj, att_mat, lin))

    ref = reference(x, adj, w_gat, b_gat, att_src, att_dst, w_l, b_l)
    assert out.shape == (B, N, OUT_DIMS)
    # Tolerance accounts for pl.reciprocal(approx=True) in the softmax denominator.
    err = float(np.max(np.abs(np.asarray(out) - np.asarray(ref))))
    assert np.allclose(np.asarray(out), np.asarray(ref), rtol=2e-3, atol=2e-3), err

    print("KERNEL_OK")
</pallas_src>

<mosaic_0001>
module attributes {stable_mosaic.version = 11 : i64} {
  func.func @gat_kernel(%arg0: i32, %arg1: memref<4x16x8xf32, #tpu.memory_space<vmem>>, %arg2: memref<4x16x16xf32, #tpu.memory_space<vmem>>, %arg3: memref<9x32xf32, #tpu.memory_space<vmem>>, %arg4: memref<32x8xf32, #tpu.memory_space<vmem>>, %arg5: memref<33x8xf32, #tpu.memory_space<vmem>>, %arg6: memref<4x16x8xf32, #tpu.memory_space<vmem>>) attributes {dimension_semantics = [#tpu.dimension_semantics<parallel>], iteration_bounds = array<i64: 1>, scalar_prefetch = 0 : i64, scratch_operands = 0 : i64, tpu.core_type = #tpu.core_type<tc>, window_params = [{transform_indices = @transform_0, window_bounds = array<i64: 4, 16, 8>}, {transform_indices = @transform_1, window_bounds = array<i64: 4, 16, 16>}, {pipeline_mode = #tpu.pipeline_mode<synchronous>, transform_indices = @transform_2, window_bounds = array<i64: 9, 32>}, {pipeline_mode = #tpu.pipeline_mode<synchronous>, transform_indices = @transform_3, window_bounds = array<i64: 32, 8>}, {pipeline_mode = #tpu.pipeline_mode<synchronous>, transform_indices = @transform_4, window_bounds = array<i64: 33, 8>}, {transform_indices = @transform_5, window_bounds = array<i64: 4, 16, 8>}]} {
    %c0 = arith.constant 0 : index
    %c0_0 = arith.constant 0 : index
    %0 = vector.load %arg3[%c0, %c0_0] : memref<9x32xf32, #tpu.memory_space<vmem>>, vector<9x32xf32>
    %1 = vector.extract_strided_slice %0 {offsets = [0, 0], sizes = [8, 32], strides = [1, 1]} : vector<9x32xf32> to vector<8x32xf32>
    %2 = vector.extract_strided_slice %0 {offsets = [8, 0], sizes = [1, 32], strides = [1, 1]} : vector<9x32xf32> to vector<1x32xf32>
    %c0_1 = arith.constant 0 : index
    %c0_2 = arith.constant 0 : index
    %3 = vector.load %arg5[%c0_1, %c0_2] : memref<33x8xf32, #tpu.memory_space<vmem>>, vector<33x8xf32>
    %4 = vector.extract_strided_slice %3 {offsets = [0, 0], sizes = [32, 8], strides = [1, 1]} : vector<33x8xf32> to vector<32x8xf32>
    %5 = vector.extract_strided_slice %3 {offsets = [32, 0], sizes = [1, 8], strides = [1, 1]} : vector<33x8xf32> to vector<1x8xf32>
    %c0_3 = arith.constant 0 : index
    %c0_4 = arith.constant 0 : index
    %c0_5 = arith.constant 0 : index
    %6 = vector.load %arg1[%c0_3, %c0_4, %c0_5] : memref<4x16x8xf32, #tpu.memory_space<vmem>>, vector<4x16x8xf32>
    %7 = vector.shape_cast %6 : vector<4x16x8xf32> to vector<64x8xf32>
    %cst = arith.constant dense<0.000000e+00> : vector<64x32xf32>
    %8 = tpu.matmul %7, %1, %cst {dimension_numbers = #tpu.dot_dimension_numbers<[1], [0], [0], [1], [0, 0, 1, 1], [], []>} : vector<64x8xf32>, vector<8x32xf32>, vector<64x32xf32> -> vector<64x32xf32>
    %c0_6 = arith.constant 0 : index
    %c0_7 = arith.constant 0 : index
    %9 = vector.load %arg4[%c0_6, %c0_7] : memref<32x8xf32, #tpu.memory_space<vmem>>, vector<32x8xf32>
    %cst_8 = arith.constant dense<0.000000e+00> : vector<64x8xf32>
    %10 = tpu.matmul %8, %9, %cst_8 {dimension_numbers = #tpu.dot_dimension_numbers<[1], [0], [0], [1], [0, 0, 1, 1], [], []>} : vector<64x32xf32>, vector<32x8xf32>, vector<64x8xf32> -> vector<64x8xf32>
    %11 = vector.shape_cast %10 : vector<64x8xf32> to vector<4x16x8xf32>
    %12 = tpu.transpose %11, [0, 2, 1] : vector<4x16x8xf32> -> vector<4x8x16xf32>
    %13 = vector.extract_strided_slice %12 {offsets = [0, 0, 0], sizes = [4, 4, 16], strides = [1, 1, 1]} : vector<4x8x16xf32> to vector<4x4x16xf32>
    %14 = vector.extract_strided_slice %12 {offsets = [0, 4, 0], sizes = [4, 4, 16], strides = [1, 1, 1]} : vector<4x8x16xf32> to vector<4x4x16xf32>
    %15 = vector.shape_cast %13 : vector<4x4x16xf32> to vector<4x4x16x1xf32>
    %16 = vector.shape_cast %14 : vector<4x4x16xf32> to vector<4x4x1x16xf32>
    %17 = vector.broadcast %15 : vector<4x4x16x1xf32> to vector<4x4x16x16xf32>
    %18 = vector.broadcast %16 : vector<4x4x1x16xf32> to vector<4x4x16x16xf32>
    %19 = arith.addf %17, %18 : vector<4x4x16x16xf32>
    %cst_9 = arith.constant 0.000000e+00 : f32
    %20 = vector.broadcast %cst_9 : f32 to vector<4x4x16x16xf32>
    %21 = arith.cmpf oge, %19, %20 : vector<4x4x16x16xf32>
    %cst_10 = arith.constant 2.000000e-01 : f32
    %22 = vector.broadcast %cst_10 : f32 to vector<4x4x16x16xf32>
    %23 = arith.mulf %22, %19 : vector<4x4x16x16xf32>
    %24 = arith.select %21, %19, %23 : vector<4x4x16x16xi1>, vector<4x4x16x16xf32>
    %c0_11 = arith.constant 0 : index
    %c0_12 = arith.constant 0 : index
    %c0_13 = arith.constant 0 : index
    %25 = vector.load %arg2[%c0_11, %c0_12, %c0_13] : memref<4x16x16xf32, #tpu.memory_space<vmem>>, vector<4x16x16xf32>
    %26 = vector.shape_cast %25 : vector<4x16x16xf32> to vector<4x1x16x16xf32>
    %27 = vector.broadcast %26 : vector<4x1x16x16xf32> to vector<4x4x16x16xf32>
    %28 = arith.addf %24, %27 : vector<4x4x16x16xf32>
    %29 = vector.shape_cast %28 : vector<4x4x16x16xf32> to vector<16x16x16xf32>
    %cst_14 = arith.constant dense<0xFF800000> : vector<16x16xf32>
    %30 = vector.multi_reduction <maximumf>, %29, %cst_14 [2] : vector<16x16x16xf32> to vector<16x16xf32>
    %31 = vector.shape_cast %30 : vector<16x16xf32> to vector<16x16x1xf32>
    %32 = vector.broadcast %31 : vector<16x16x1xf32> to vector<16x16x16xf32>
    %33 = arith.subf %29, %32 : vector<16x16x16xf32>
    %34 = math.exp %33 : vector<16x16x16xf32>
    %cst_15 = arith.constant dense<0.000000e+00> : vector<16x16xf32>
    %35 = vector.multi_reduction <add>, %34, %cst_15 [2] : vector<16x16x16xf32> to vector<16x16xf32>
    %36 = vector.shape_cast %35 : vector<16x16xf32> to vector<16x16x1xf32>
    %37 = tpu.reciprocal %36 {approx = true} : vector<16x16x1xf32> -> vector<16x16x1xf32>
    %38 = vector.broadcast %37 : vector<16x16x1xf32> to vector<16x16x16xf32>
    %39 = arith.mulf %34, %38 : vector<16x16x16xf32>
    %40 = vector.shape_cast %8 : vector<64x32xf32> to vector<4x16x32xf32>
    %41 = vector.extract_strided_slice %40 {offsets = [0, 0, 0], sizes = [4, 16, 8], strides = [1, 1, 1]} : vector<4x16x32xf32> to vector<4x16x8xf32>
    %42 = vector.extract_strided_slice %40 {offsets = [0, 0, 8], sizes = [4, 16, 8], strides = [1, 1, 1]} : vector<4x16x32xf32> to vector<4x16x8xf32>
    %43 = vector.extract_strided_slice %40 {offsets = [0, 0, 16], sizes = [4, 16, 8], strides = [1, 1, 1]} : vector<4x16x32xf32> to vector<4x16x8xf32>
    %44 = vector.extract_strided_slice %40 {offsets = [0, 0, 24], sizes = [4, 16, 8], strides = [1, 1, 1]} : vector<4x16x32xf32> to vector<4x16x8xf32>
    %45 = vector.shape_cast %41 : vector<4x16x8xf32> to vector<4x1x16x8xf32>
    %46 = vector.shape_cast %42 : vector<4x16x8xf32> to vector<4x1x16x8xf32>
    %47 = vector.shape_cast %43 : vector<4x16x8xf32> to vector<4x1x16x8xf32>
    %48 = vector.shape_cast %44 : vector<4x16x8xf32> to vector<4x1x16x8xf32>
    %49 = tpu.concatenate %45, %46, %47, %48 in 1 : vector<4x1x16x8xf32>, vector<4x1x16x8xf32>, vector<4x1x16x8xf32>, vector<4x1x16x8xf32> -> vector<4x4x16x8xf32>
    %50 = vector.shape_cast %49 : vector<4x4x16x8xf32> to vector<16x16x8xf32>
    "tpu.trace_start"() <{level = 10 : i32, message = "bij,bjd->bid"}> : () -> ()
    %cst_16 = arith.constant dense<0.000000e+00> : vector<16x16x8xf32>
    %51 = tpu.matmul %39, %50, %cst_16 {dimension_numbers = #tpu.dot_dimension_numbers<[2], [1], [1], [2], [0, 0, 0, 1, 1, 2], [0], [0]>} : vector<16x16x16xf32>, vector<16x16x8xf32>, vector<16x16x8xf32> -> vector<16x16x8xf32>
    "tpu.trace_stop"() : () -> ()
    %52 = vector.shape_cast %51 : vector<16x16x8xf32> to vector<4x4x16x8xf32>
    %53 = vector.extract_strided_slice %52 {offsets = [0, 0, 0, 0], sizes = [4, 1, 16, 8], strides = [1, 1, 1, 1]} : vector<4x4x16x8xf32> to vector<4x1x16x8xf32>
    %54 = vector.shape_cast %53 : vector<4x1x16x8xf32> to vector<4x16x8xf32>
    %55 = vector.extract_strided_slice %52 {offsets = [0, 1, 0, 0], sizes = [4, 1, 16, 8], strides = [1, 1, 1, 1]} : vector<4x4x16x8xf32> to vector<4x1x16x8xf32>
    %56 = vector.shape_cast %55 : vector<4x1x16x8xf32> to vector<4x16x8xf32>
    %57 = vector.extract_strided_slice %52 {offsets = [0, 2, 0, 0], sizes = [4, 1, 16, 8], strides = [1, 1, 1, 1]} : vector<4x4x16x8xf32> to vector<4x1x16x8xf32>
    %58 = vector.shape_cast %57 : vector<4x1x16x8xf32> to vector<4x16x8xf32>
    %59 = vector.extract_strided_slice %52 {offsets = [0, 3, 0, 0], sizes = [4, 1, 16, 8], strides = [1, 1, 1, 1]} : vector<4x4x16x8xf32> to vector<4x1x16x8xf32>
    %60 = vector.shape_cast %59 : vector<4x1x16x8xf32> to vector<4x16x8xf32>
    %61 = tpu.concatenate %54, %56, %58, %60 in 2 : vector<4x16x8xf32>, vector<4x16x8xf32>, vector<4x16x8xf32>, vector<4x16x8xf32> -> vector<4x16x32xf32>
    %62 = vector.shape_cast %61 : vector<4x16x32xf32> to vector<64x32xf32>
    %63 = vector.broadcast %2 : vector<1x32xf32> to vector<64x32xf32>
    %64 = arith.addf %62, %63 : vector<64x32xf32>
    %cst_17 = arith.constant 0.000000e+00 : f32
    %65 = vector.broadcast %cst_17 : f32 to vector<64x32xf32>
    %66 = arith.maximumf %64, %65 : vector<64x32xf32>
    %cst_18 = arith.constant dense<0.000000e+00> : vector<64x8xf32>
    %67 = tpu.matmul %66, %4, %cst_18 {dimension_numbers = #tpu.dot_dimension_numbers<[1], [0], [0], [1], [0, 0, 1, 1], [], []>} : vector<64x32xf32>, vector<32x8xf32>, vector<64x8xf32> -> vector<64x8xf32>
    %68 = vector.broadcast %5 : vector<1x8xf32> to vector<64x8xf32>
    %69 = arith.addf %67, %68 : vector<64x8xf32>
    %70 = vector.shape_cast %69 : vector<64x8xf32> to vector<4x16x8xf32>
    %c0_19 = arith.constant 0 : index
    %c0_20 = arith.constant 0 : index
    %c0_21 = arith.constant 0 : index
    %71 = vector.load %arg6[%c0_19, %c0_20, %c0_21] : memref<4x16x8xf32, #tpu.memory_space<vmem>>, vector<4x16x8xf32>
    tpu.vector_store %arg6[%c0_19, %c0_20, %c0_21], %70 {strides = array<i32>} : memref<4x16x8xf32, #tpu.memory_space<vmem>>, vector<4x16x8xf32>,
    return
  }
  func.func @transform_0(%arg0: i32) -> (i32, i32, i32) {
    %c0_i32 = arith.constant 0 : i32
    %c0_i32_0 = arith.constant 0 : i32
    %c0_i32_1 = arith.constant 0 : i32
    return %arg0, %c0_i32, %c0_i32_0 : i32, i32, i32
  }
  func.func @transform_1(%arg0: i32) -> (i32, i32, i32) {
    %c0_i32 = arith.constant 0 : i32
    %c0_i32_0 = arith.constant 0 : i32
    %c0_i32_1 = arith.constant 0 : i32
    return %arg0, %c0_i32, %c0_i32_0 : i32, i32, i32
  }
  func.func @transform_2(%arg0: i32) -> (i32, i32) {
    %c0_i32 = arith.constant 0 : i32
    %c0_i32_0 = arith.constant 0 : i32
    %c0_i32_1 = arith.constant 0 : i32
    return %c0_i32, %c0_i32_0 : i32, i32
  }
  func.func @transform_3(%arg0: i32) -> (i32, i32) {
    %c0_i32 = arith.constant 0 : i32
    %c0_i32_0 = arith.constant 0 : i32
    %c0_i32_1 = arith.constant 0 : i32
    return %c0_i32, %c0_i32_0 : i32, i32
  }
  func.func @transform_4(%arg0: i32) -> (i32, i32) {
    %c0_i32 = arith.constant 0 : i32
    %c0_i32_0 = arith.constant 0 : i32
    %c0_i32_1 = arith.constant 0 : i32
    return %c0_i32, %c0_i32_0 : i32, i32
  }
  func.func @transform_5(%arg0: i32) -> (i32, i32, i32) {
    %c0_i32 = arith.constant 0 : i32
    %c0_i32_0 = arith.constant 0 : i32
    %c0_i32_1 = arith.constant 0 : i32
    return %arg0, %c0_i32, %c0_i32_0 : i32, i32, i32
  }
}

</mosaic_0001>

<llo_original>
// kernel: gat_forward.1
$region0: #{gat_forward.1}
  #allocation0 [shape = 'u32[]', space=smem, size = 0x4, offset = 0x4, fixed_abs, tag = 'smem constant byte address 0x4 - core index']
  #allocation1 [shape = 'u32[72,128]{1,0:T(1,128)}', space=vmem, size = 0x9000, scoped, tag = 'internal scratch']
  %s0 = inlined_call_operand.vmem [shape: f32[4,16,8], index: 0, kind: input, shape index: {}]
  %s1 = inlined_call_operand.vmem [shape: f32[4,16,16], index: 1, kind: input, shape index: {}]
  %s2 = inlined_call_operand.vmem [shape: f32[9,32], index: 2, kind: input, shape index: {}]
  %s3 = inlined_call_operand.vmem [shape: f32[32,8], index: 3, kind: input, shape index: {}]
  %s4 = inlined_call_operand.vmem [shape: f32[33,8], index: 4, kind: input, shape index: {}]
  %s5 = inlined_call_operand.vmem [shape: f32[4,16,8], index: 5, kind: output, shape index: {}]
  %s6 = sld [smem:[#allocation0]]
  $region30: #{gat_forward.1} parent=0
    _
  %s8 = ssub.s32 1, %s6
  %s9 = scalar_select 0, %s8, %s6
  // Predicated region
  $region2: #{gat_forward.1} parent=0 // pred_check
    _
  $region3: #{gat_forward.1} parent=0 // pred_check_branch
    %11 = sbr.rel (0) target = $region5
  $region4: #{gat_forward.1} parent=0 // pred_region
    _
  $region5: #{gat_forward.1} parent=0 // pred_fallthru
    _
  // Predicated region
  $region6: #{gat_forward.1} parent=0 // pred_check
    _
  $region7: #{gat_forward.1} parent=0 // pred_check_branch
    %13 = sbr.rel (0) target = $region9
  $region8: #{gat_forward.1} parent=0 // pred_region
    _
  $region9: #{gat_forward.1} parent=0 // pred_fallthru
    _
  // Predicated region
  $region10: #{gat_forward.1} parent=0 // pred_check
    _
  $region11: #{gat_forward.1} parent=0 // pred_check_branch
    %15 = sbr.rel (0) target = $region13
  $region12: #{gat_forward.1} parent=0 // pred_region
    _
  $region13: #{gat_forward.1} parent=0 // pred_fallthru
    _
  // Predicated region
  $region14: #{gat_forward.1} parent=0 // pred_check
    _
  $region15: #{gat_forward.1} parent=0 // pred_check_branch
    %17 = sbr.rel (0) target = $region17
  $region16: #{gat_forward.1} parent=0 // pred_region
    _
  $region17: #{gat_forward.1} parent=0 // pred_fallthru
    _
  // Predicated region
  $region18: #{gat_forward.1} parent=0 // pred_check
    _
  $region19: #{gat_forward.1} parent=0 // pred_check_branch
    %19 = sbr.rel (0) target = $region21
  $region20: #{gat_forward.1} parent=0 // pred_region
    _
  $region21: #{gat_forward.1} parent=0 // pred_fallthru
    _
  %v20 = vld [vmem:[%s2] sm:$0xff]
  %v21 = vld [vmem:[%s2 + $0x8] sm:$0x1]
  %v22 = vld [vmem:[%s4] sm:$0xff]
  %v23 = vld [vmem:[%s4 + $0x8] sm:$0xff]
  %v24 = vld [vmem:[%s4 + $0x10] sm:$0xff]
  %v25 = vld [vmem:[%s4 + $0x18] sm:$0xff]
  %v26 = vld [vmem:[%s4 + $0x20] sm:$0x1]
  %v27 = vld [vmem:[%s0] sm:$0xff]
  %v28 = vld [vmem:[%s0 + $0x8] sm:$0xff]
  %v29 = vld [vmem:[%s0 + $0x10] sm:$0xff]
  %v30 = vld [vmem:[%s0 + $0x18] sm:$0xff]
  %v31 = vld [vmem:[%s0 + $0x20] sm:$0xff]
  %v32 = vld [vmem:[%s0 + $0x28] sm:$0xff]
  %v33 = vld [vmem:[%s0 + $0x30] sm:$0xff]
  %v34 = vld [vmem:[%s0 + $0x38] sm:$0xff]
  %vm35 = vcmask 64512
  %v37 = vsel %vm35, %v27, 0
  %v40 = vsel %vm35, %v28, 0
  %v43 = vsel %vm35, %v29, 0
  %v46 = vsel %vm35, %v30, 0
  %v49 = vsel %vm35, %v31, 0
  %v52 = vsel %vm35, %v32, 0
  %v55 = vsel %vm35, %v33, 0
  %v58 = vsel %vm35, %v34, 0
  %60 = vmatpush.msra.mxu0 0.0
  %61 = vmatpush.msra.mxu0 0.0
  %62 = vmatpush.msra.mxu0 0.0
  %63 = vmatpush.msra.mxu0 0.0
  %64 = vmatpush.msra.mxu0 0.0
  %65 = vmatpush.msra.mxu0 0.0
  %66 = vmatpush.msra.mxu0 0.0
  %67 = vmatpush.msra.mxu0 0.0
  %68 = vmatpush.msra.mxu0 0.0
  %69 = vmatpush.msra.mxu0 0.0
  %70 = vmatpush.msra.mxu0 0.0
  %71 = vmatpush.msra.mxu0 0.0
  %72 = vmatpush.msra.mxu0 0.0
  %73 = vmatpush.msra.mxu0 0.0
  %74 = vmatpush.msra.mxu0 0.0
  %75 = vmatpush.msra.mxu0 %v20
  %76 = vmatmul.f32.gmra.mxu0 %v37
  %v77 = vpop.f32.mrf.mxu0
  %v78 = vadd.f32 0.0, %v77
  %79 = vmatmul.f32.gmra.mxu0 %v40
  %v80 = vpop.f32.mrf.mxu0
  %v81 = vadd.f32 0.0, %v80
  %82 = vmatmul.f32.gmra.mxu0 %v43
  %v83 = vpop.f32.mrf.mxu0
  %v84 = vadd.f32 0.0, %v83
  %85 = vmatmul.f32.gmra.mxu0 %v46
  %v86 = vpop.f32.mrf.mxu0
  %v87 = vadd.f32 0.0, %v86
  %88 = vmatmul.f32.gmra.mxu0 %v49
  %v89 = vpop.f32.mrf.mxu0
  %v90 = vadd.f32 0.0, %v89
  %91 = vmatmul.f32.gmra.mxu0 %v52
  %v92 = vpop.f32.mrf.mxu0
  %v93 = vadd.f32 0.0, %v92
  %94 = vmatmul.f32.gmra.mxu0 %v55
  %v95 = vpop.f32.mrf.mxu0
  %v96 = vadd.f32 0.0, %v95
  %97 = vmatmul.f32.gmra.mxu0 %v58
  %v98 = vpop.f32.mrf.mxu0
  %v99 = vadd.f32 0.0, %v98
  %100 = vdwg.mxu0
  %v101 = vld [vmem:[%s3] sm:$0xff]
  %v102 = vld [vmem:[%s3 + $0x8] sm:$0xff]
  %v103 = vld [vmem:[%s3 + $0x10] sm:$0xff]
  %v104 = vld [vmem:[%s3 + $0x18] sm:$0xff]
  %vm105 = vcmask 261120
  %v107 = vsel %vm105, %v78, 0
  %v110 = vsel %vm105, %v81, 0
  %v113 = vsel %vm105, %v84, 0
  %v116 = vsel %vm105, %v87, 0
  %v119 = vsel %vm105, %v90, 0
  %v122 = vsel %vm105, %v93, 0
  %v125 = vsel %vm105, %v96, 0
  %v128 = vsel %vm105, %v99, 0
  %130 = vmatpush.msra.mxu0 0.0
  %131 = vmatpush.msra.mxu0 0.0
  %132 = vmatpush.msra.mxu0 0.0
  %133 = vmatpush.msra.mxu0 0.0
  %134 = vmatpush.msra.mxu0 0.0
  %135 = vmatpush.msra.mxu0 0.0
  %136 = vmatpush.msra.mxu0 0.0
  %137 = vmatpush.msra.mxu0 0.0
  %138 = vmatpush.msra.mxu0 0.0
  %139 = vmatpush.msra.mxu0 0.0
  %140 = vmatpush.msra.mxu0 0.0
  %141 = vmatpush.msra.mxu0 0.0
  %142 = vmatpush.msra.mxu0 %v104
  %143 = vmatpush.msra.mxu0 %v103
  %144 = vmatpush.msra.mxu0 %v102
  %145 = vmatpush.msra.mxu0 %v101
  %146 = vmatmul.f32.gmra.mxu0 %v107
  %v147 = vpop.f32.mrf.mxu0
  %v148 = vadd.f32 0.0, %v147
  %149 = vmatmul.f32.gmra.mxu0 %v110
  %v150 = vpop.f32.mrf.mxu0
  %v151 = vadd.f32 0.0, %v150
  %152 = vmatmul.f32.gmra.mxu0 %v113
  %v153 = vpop.f32.mrf.mxu0
  %v154 = vadd.f32 0.0, %v153
  %155 = vmatmul.f32.gmra.mxu0 %v116
  %v156 = vpop.f32.mrf.mxu0
  %v157 = vadd.f32 0.0, %v156
  %158 = vmatmul.f32.gmra.mxu0 %v119
  %v159 = vpop.f32.mrf.mxu0
  %v160 = vadd.f32 0.0, %v159
  %161 = vmatmul.f32.gmra.mxu0 %v122
  %v162 = vpop.f32.mrf.mxu0
  %v163 = vadd.f32 0.0, %v162
  %164 = vmatmul.f32.gmra.mxu0 %v125
  %v165 = vpop.f32.mrf.mxu0
  %v166 = vadd.f32 0.0, %v165
  %167 = vmatmul.f32.gmra.mxu0 %v128
  %v168 = vpop.f32.mrf.mxu0
  %v169 = vadd.f32 0.0, %v168
  %170 = vdwg.mxu0
  %171 = vxpose.xlu0.b32.start [1/16] %v148, 128
  %172 = vxpose.xlu0.b32.cont [2/16] %v151, 128
  %173 = vxpose.xlu0.b32.cont [3/16] 0.0, 128
  %174 = vxpose.xlu0.b32.cont [4/16] 0.0, 128
  %175 = vxpose.xlu0.b32.cont [5/16] 0.0, 128
  %176 = vxpose.xlu0.b32.cont [6/16] 0.0, 128
  %177 = vxpose.xlu0.b32.cont [7/16] 0.0, 128
  %178 = vxpose.xlu0.b32.cont [8/16] 0.0, 128
  %179 = vxpose.xlu0.b32.cont [9/16] 0.0, 128
  %180 = vxpose.xlu0.b32.cont [10/16] 0.0, 128
  %181 = vxpose.xlu0.b32.cont [11/16] 0.0, 128
  %182 = vxpose.xlu0.b32.cont [12/16] 0.0, 128
  %183 = vxpose.xlu0.b32.cont [13/16] 0.0, 128
  %184 = vxpose.xlu0.b32.cont [14/16] 0.0, 128
  %185 = vxpose.xlu0.b32.cont [15/16] 0.0, 128
  %186 = vxpose.xlu0.b32.end [16/16] 0.0, 128
  %v187 = vpop.trf.xlu0
  %v188 = vpop.trf.xlu0
  %v189 = vpop.trf.xlu0
  %v190 = vpop.trf.xlu0
  %v191 = vpop.trf.xlu0
  %v192 = vpop.trf.xlu0
  %v193 = vpop.trf.xlu0
  %v194 = vpop.trf.xlu0
  %v195 = vpop.trf.xlu0
  %v196 = vpop.trf.xlu0
  %v197 = vpop.trf.xlu0
  %v198 = vpop.trf.xlu0
  %v199 = vpop.trf.xlu0
  %v200 = vpop.trf.xlu0
  %v201 = vpop.trf.xlu0
  %v202 = vpop.trf.xlu0
  %203 = vxpose.xlu0.b32.start [1/16] %v154, 128
  %204 = vxpose.xlu0.b32.cont [2/16] %v157, 128
  %205 = vxpose.xlu0.b32.cont [3/16] 0.0, 128
  %206 = vxpose.xlu0.b32.cont [4/16] 0.0, 128
  %207 = vxpose.xlu0.b32.cont [5/16] 0.0, 128
  %208 = vxpose.xlu0.b32.cont [6/16] 0.0, 128
  %209 = vxpose.xlu0.b32.cont [7/16] 0.0, 128
  %210 = vxpose.xlu0.b32.cont [8/16] 0.0, 128
  %211 = vxpose.xlu0.b32.cont [9/16] 0.0, 128
  %212 = vxpose.xlu0.b32.cont [10/16] 0.0, 128
  %213 = vxpose.xlu0.b32.cont [11/16] 0.0, 128
  %214 = vxpose.xlu0.b32.cont [12/16] 0.0, 128
  %215 = vxpose.xlu0.b32.cont [13/16] 0.0, 128
  %216 = vxpose.xlu0.b32.cont [14/16] 0.0, 128
  %217 = vxpose.xlu0.b32.cont [15/16] 0.0, 128
  %218 = vxpose.xlu0.b32.end [16/16] 0.0, 128
  %v219 = vpop.trf.xlu0
  %v220 = vpop.trf.xlu0
  %v221 = vpop.trf.xlu0
  %v222 = vpop.trf.xlu0
  %v223 = vpop.trf.xlu0
  %v224 = vpop.trf.xlu0
  %v225 = vpop.trf.xlu0
  %v226 = vpop.trf.xlu0
  %v227 = vpop.trf.xlu0
  %v228 = vpop.trf.xlu0
  %v229 = vpop.trf.xlu0
  %v230 = vpop.trf.xlu0
  %v231 = vpop.trf.xlu0
  %v232 = vpop.trf.xlu0
  %v233 = vpop.trf.xlu0
  %v234 = vpop.trf.xlu0
  %235 = vxpose.xlu0.b32.start [1/16] %v160, 128
  %236 = vxpose.xlu0.b32.cont [2/16] %v163, 128
  %237 = vxpose.xlu0.b32.cont [3/16] 0.0, 128
  %238 = vxpose.xlu0.b32.cont [4/16] 0.0, 128
  %239 = vxpose.xlu0.b32.cont [5/16] 0.0, 128
  %240 = vxpose.xlu0.b32.cont [6/16] 0.0, 128
  %241 = vxpose.xlu0.b32.cont [7/16] 0.0, 128
  %242 = vxpose.xlu0.b32.cont [8/16] 0.0, 128
  %243 = vxpose.xlu0.b32.cont [9/16] 0.0, 128
  %244 = vxpose.xlu0.b32.cont [10/16] 0.0, 128
  %245 = vxpose.xlu0.b32.cont [11/16] 0.0, 128
  %246 = vxpose.xlu0.b32.cont [12/16] 0.0, 128
  %247 = vxpose.xlu0.b32.cont [13/16] 0.0, 128
  %248 = vxpose.xlu0.b32.cont [14/16] 0.0, 128
  %249 = vxpose.xlu0.b32.cont [15/16] 0.0, 128
  %250 = vxpose.xlu0.b32.end [16/16] 0.0, 128
  %v251 = vpop.trf.xlu0
  %v252 = vpop.trf.xlu0
  %v253 = vpop.trf.xlu0
  %v254 = vpop.trf.xlu0
  %v255 = vpop.trf.xlu0
  %v256 = vpop.trf.xlu0
  %v257 = vpop.trf.xlu0
  %v258 = vpop.trf.xlu0
  %v259 = vpop.trf.xlu0
  %v260 = vpop.trf.xlu0
  %v261 = vpop.trf.xlu0
  %v262 = vpop.trf.xlu0
  %v263 = vpop.trf.xlu0
  %v264 = vpop.trf.xlu0
  %v265 = vpop.trf.xlu0
  %v266 = vpop.trf.xlu0
  %267 = vxpose.xlu0.b32.start [1/16] %v166, 128
  %268 = vxpose.xlu0.b32.cont [2/16] %v169, 128
  %269 = vxpose.xlu0.b32.cont [3/16] 0.0, 128
  %270 = vxpose.xlu0.b32.cont [4/16] 0.0, 128
  %271 = vxpose.xlu0.b32.cont [5/16] 0.0, 128
  %272 = vxpose.xlu0.b32.cont [6/16] 0.0, 128
  %273 = vxpose.xlu0.b32.cont [7/16] 0.0, 128
  %274 = vxpose.xlu0.b32.cont [8/16] 0.0, 128
  %275 = vxpose.xlu0.b32.cont [9/16] 0.0, 128
  %276 = vxpose.xlu0.b32.cont [10/16] 0.0, 128
  %277 = vxpose.xlu0.b32.cont [11/16] 0.0, 128
  %278 = vxpose.xlu0.b32.cont [12/16] 0.0, 128
  %279 = vxpose.xlu0.b32.cont [13/16] 0.0, 128
  %280 = vxpose.xlu0.b32.cont [14/16] 0.0, 128
  %281 = vxpose.xlu0.b32.cont [15/16] 0.0, 128
  %282 = vxpose.xlu0.b32.end [16/16] 0.0, 128
  %v283 = vpop.trf.xlu0
  %v284 = vpop.trf.xlu0
  %v285 = vpop.trf.xlu0
  %v286 = vpop.trf.xlu0
  %v287 = vpop.trf.xlu0
  %v288 = vpop.trf.xlu0
  %v289 = vpop.trf.xlu0
  %v290 = vpop.trf.xlu0
  %v291 = vpop.trf.xlu0
  %v292 = vpop.trf.xlu0
  %v293 = vpop.trf.xlu0
  %v294 = vpop.trf.xlu0
  %v295 = vpop.trf.xlu0
  %v296 = vpop.trf.xlu0
  %v297 = vpop.trf.xlu0
  %v298 = vpop.trf.xlu0
  %v299 = vperm.slane %v187, 0
  %v300 = vlaneseq
  %v301 = vshrl.u32 %v300, 7
  %303 = vset.pattern.permute.xlu0 %v301
  %304 = vperm.xlu0 %303, %v299
  %v305 = vpop.permute.xlu0 %304
  %v306 = vlaneseq
  %v307 = vshrl.u32 %v306, 7
  %v308 = vadd.s32 %v307, 8
  %309 = vset.pattern.permute.xlu0 %v308
  %310 = vperm.xlu0 %309, %v299
  %v311 = vpop.permute.xlu0 %310
  %v312 = vperm.slane %v187, 1
  %v313 = vlaneseq
  %v314 = vshrl.u32 %v313, 7
  %316 = vset.pattern.permute.xlu0 %v314
  %317 = vperm.xlu0 %316, %v312
  %v318 = vpop.permute.xlu0 %317
  %v319 = vlaneseq
  %v320 = vshrl.u32 %v319, 7
  %v321 = vadd.s32 %v320, 8
  %322 = vset.pattern.permute.xlu0 %v321
  %323 = vperm.xlu0 %322, %v312
  %v324 = vpop.permute.xlu0 %323
  %v325 = vperm.slane %v187, 2
  %v326 = vlaneseq
  %v327 = vshrl.u32 %v326, 7
  %329 = vset.pattern.permute.xlu0 %v327
  %330 = vperm.xlu0 %329, %v325
  %v331 = vpop.permute.xlu0 %330
  %v332 = vlaneseq
  %v333 = vshrl.u32 %v332, 7
  %v334 = vadd.s32 %v333, 8
  %335 = vset.pattern.permute.xlu0 %v334
  %336 = vperm.xlu0 %335, %v325
  %v337 = vpop.permute.xlu0 %336
  %v338 = vperm.slane %v187, 3
  %v339 = vlaneseq
  %v340 = vshrl.u32 %v339, 7
  %342 = vset.pattern.permute.xlu0 %v340
  %343 = vperm.xlu0 %342, %v338
  %v344 = vpop.permute.xlu0 %343
  %v345 = vlaneseq
  %v346 = vshrl.u32 %v345, 7
  %v347 = vadd.s32 %v346, 8
  %348 = vset.pattern.permute.xlu0 %v347
  %349 = vperm.xlu0 %348, %v338
  %v350 = vpop.permute.xlu0 %349
  %v351 = vperm.slane %v219, 0
  %v352 = vlaneseq
  %v353 = vshrl.u32 %v352, 7
  %355 = vset.pattern.permute.xlu0 %v353
  %356 = vperm.xlu0 %355, %v351
  %v357 = vpop.permute.xlu0 %356
  %v358 = vlaneseq
  %v359 = vshrl.u32 %v358, 7
  %v360 = vadd.s32 %v359, 8
  %361 = vset.pattern.permute.xlu0 %v360
  %362 = vperm.xlu0 %361, %v351
  %v363 = vpop.permute.xlu0 %362
  %v364 = vperm.slane %v219, 1
  %v365 = vlaneseq
  %v366 = vshrl.u32 %v365, 7
  %368 = vset.pattern.permute.xlu0 %v366
  %369 = vperm.xlu0 %368, %v364
  %v370 = vpop.permute.xlu0 %369
  %v371 = vlaneseq
  %v372 = vshrl.u32 %v371, 7
  %v373 = vadd.s32 %v372, 8
  %374 = vset.pattern.permute.xlu0 %v373
  %375 = vperm.xlu0 %374, %v364
  %v376 = vpop.permute.xlu0 %375
  %v377 = vperm.slane %v219, 2
  %v378 = vlaneseq
  %v379 = vshrl.u32 %v378, 7
  %381 = vset.pattern.permute.xlu0 %v379
  %382 = vperm.xlu0 %381, %v377
  %v383 = vpop.permute.xlu0 %382
  %v384 = vlaneseq
  %v385 = vshrl.u32 %v384, 7
  %v386 = vadd.s32 %v385, 8
  %387 = vset.pattern.permute.xlu0 %v386
  %388 = vperm.xlu0 %387, %v377
  %v389 = vpop.permute.xlu0 %388
  %v390 = vperm.slane %v219, 3
  %v391 = vlaneseq
  %v392 = vshrl.u32 %v391, 7
  %394 = vset.pattern.permute.xlu0 %v392
  %395 = vperm.xlu0 %394, %v390
  %v396 = vpop.permute.xlu0 %395
  %v397 = vlaneseq
  %v398 = vshrl.u32 %v397, 7
  %v399 = vadd.s32 %v398, 8
  %400 = vset.pattern.permute.xlu0 %v399
  %401 = vperm.xlu0 %400, %v390
  %v402 = vpop.permute.xlu0 %401
  %v403 = vperm.slane %v251, 0
  %v404 = vlaneseq
  %v405 = vshrl.u32 %v404, 7
  %407 = vset.pattern.permute.xlu0 %v405
  %408 = vperm.xlu0 %407, %v403
  %v409 = vpop.permute.xlu0 %408
  %v410 = vlaneseq
  %v411 = vshrl.u32 %v410, 7
  %v412 = vadd.s32 %v411, 8
  %413 = vset.pattern.permute.xlu0 %v412
  %414 = vperm.xlu0 %413, %v403
  %v415 = vpop.permute.xlu0 %414
  %v416 = vperm.slane %v251, 1
  %v417 = vlaneseq
  %v418 = vshrl.u32 %v417, 7
  %420 = vset.pattern.permute.xlu0 %v418
  %421 = vperm.xlu0 %420, %v416
  %v422 = vpop.permute.xlu0 %421
  %v423 = vlaneseq
  %v424 = vshrl.u32 %v423, 7
  %v425 = vadd.s32 %v424, 8
  %426 = vset.pattern.permute.xlu0 %v425
  %427 = vperm.xlu0 %426, %v416
  %v428 = vpop.permute.xlu0 %427
  %v429 = vperm.slane %v251, 2
  %v430 = vlaneseq
  %v431 = vshrl.u32 %v430, 7
  %433 = vset.pattern.permute.xlu0 %v431
  %434 = vperm.xlu0 %433, %v429
  %v435 = vpop.permute.xlu0 %434
  %v436 = vlaneseq
  %v437 = vshrl.u32 %v436, 7
  %v438 = vadd.s32 %v437, 8
  %439 = vset.pattern.permute.xlu0 %v438
  %440 = vperm.xlu0 %439, %v429
  %v441 = vpop.permute.xlu0 %440
  %v442 = vperm.slane %v251, 3
  %v443 = vlaneseq
  %v444 = vshrl.u32 %v443, 7
  %446 = vset.pattern.permute.xlu0 %v444
  %447 = vperm.xlu0 %446, %v442
  %v448 = vpop.permute.xlu0 %447
  %v449 = vlaneseq
  %v450 = vshrl.u32 %v449, 7
  %v451 = vadd.s32 %v450, 8
  %452 = vset.pattern.permute.xlu0 %v451
  %453 = vperm.xlu0 %452, %v442
  %v454 = vpop.permute.xlu0 %453
  %v455 = vperm.slane %v283, 0
  %v456 = vlaneseq
  %v457 = vshrl.u32 %v456, 7
  %459 = vset.pattern.permute.xlu0 %v457
  %460 = vperm.xlu0 %459, %v455
  %v461 = vpop.permute.xlu0 %460
  %v462 = vlaneseq
  %v463 = vshrl.u32 %v462, 7
  %v464 = vadd.s32 %v463, 8
  %465 = vset.pattern.permute.xlu0 %v464
  %466 = vperm.xlu0 %465, %v455
  %v467 = vpop.permute.xlu0 %466
  %v468 = vperm.slane %v283, 1
  %v469 = vlaneseq
  %v470 = vshrl.u32 %v469, 7
  %472 = vset.pattern.permute.xlu0 %v470
  %473 = vperm.xlu0 %472, %v468
  %v474 = vpop.permute.xlu0 %473
  %v475 = vlaneseq
  %v476 = vshrl.u32 %v475, 7
  %v477 = vadd.s32 %v476, 8
  %478 = vset.pattern.permute.xlu0 %v477
  %479 = vperm.xlu0 %478, %v468
  %v480 = vpop.permute.xlu0 %479
  %v481 = vperm.slane %v283, 2
  %v482 = vlaneseq
  %v483 = vshrl.u32 %v482, 7
  %485 = vset.pattern.permute.xlu0 %v483
  %486 = vperm.xlu0 %485, %v481
  %v487 = vpop.permute.xlu0 %486
  %v488 = vlaneseq
  %v489 = vshrl.u32 %v488, 7
  %v490 = vadd.s32 %v489, 8
  %491 = vset.pattern.permute.xlu0 %v490
  %492 = vperm.xlu0 %491, %v481
  %v493 = vpop.permute.xlu0 %492
  %v494 = vperm.slane %v283, 3
  %v495 = vlaneseq
  %v496 = vshrl.u32 %v495, 7
  %498 = vset.pattern.permute.xlu0 %v496
  %499 = vperm.xlu0 %498, %v494
  %v500 = vpop.permute.xlu0 %499
  %v501 = vlaneseq
  %v502 = vshrl.u32 %v501, 7
  %v503 = vadd.s32 %v502, 8
  %504 = vset.pattern.permute.xlu0 %v503
  %505 = vperm.xlu0 %504, %v494
  %v506 = vpop.permute.xlu0 %505
  %511 = vst [vmem:[#allocation1] sm:$0xff] %v187
  %s512 = scalar_lea.vmem [#allocation1], 4
  %v513 = vld [vmem:[%s512] ss:$9 sm:$0xff]
  %s514 = scalar_lea.vmem [#allocation1], 5
  %v515 = vld [vmem:[%s514] ss:$9 sm:$0xff]
  %s516 = scalar_lea.vmem [#allocation1], 6
  %v517 = vld [vmem:[%s516] ss:$9 sm:$0xff]
  %s518 = scalar_lea.vmem [#allocation1], 7
  %v519 = vld [vmem:[%s518] ss:$9 sm:$0xff]
  %520 = vst [vmem:[#allocation1] sm:$0xff] %v219
  %v521 = vld [vmem:[%s512] ss:$9 sm:$0xff]
  %v522 = vld [vmem:[%s514] ss:$9 sm:$0xff]
  %v523 = vld [vmem:[%s516] ss:$9 sm:$0xff]
  %v524 = vld [vmem:[%s518] ss:$9 sm:$0xff]
  %525 = vst [vmem:[#allocation1] sm:$0xff] %v251
  %v526 = vld [vmem:[%s512] ss:$9 sm:$0xff]
  %v527 = vld [vmem:[%s514] ss:$9 sm:$0xff]
  %v528 = vld [vmem:[%s516] ss:$9 sm:$0xff]
  %v529 = vld [vmem:[%s518] ss:$9 sm:$0xff]
  %530 = vst [vmem:[#allocation1] sm:$0xff] %v283
  %v531 = vld [vmem:[%s512] ss:$9 sm:$0xff]
  %v532 = vld [vmem:[%s514] ss:$9 sm:$0xff]
  %v533 = vld [vmem:[%s516] ss:$9 sm:$0xff]
  %v534 = vld [vmem:[%s518] ss:$9 sm:$0xff]
  %v535 = vperm.slane %v513, 0
  %v536 = vperm.slane %v515, 0
  %v537 = vperm.slane %v517, 0
  %v538 = vperm.slane %v519, 0
  %v539 = vperm.slane %v521, 0
  %v540 = vperm.slane %v522, 0
  %v541 = vperm.slane %v523, 0
  %v542 = vperm.slane %v524, 0
  %v543 = vperm.slane %v526, 0
  %v544 = vperm.slane %v527, 0
  %v545 = vperm.slane %v528, 0
  %v546 = vperm.slane %v529, 0
  %v547 = vperm.slane %v531, 0
  %v548 = vperm.slane %v532, 0
  %v549 = vperm.slane %v533, 0
  %v550 = vperm.slane %v534, 0
  %v567 = vadd.f32 %v305, %v535
  %v568 = vadd.f32 %v311, %v535
  %v569 = vadd.f32 %v318, %v536
  %v570 = vadd.f32 %v324, %v536
  %v571 = vadd.f32 %v331, %v537
  %v572 = vadd.f32 %v337, %v537
  %v573 = vadd.f32 %v344, %v538
  %v574 = vadd.f32 %v350, %v538
  %v575 = vadd.f32 %v357, %v539
  %v576 = vadd.f32 %v363, %v539
  %v577 = vadd.f32 %v370, %v540
  %v578 = vadd.f32 %v376, %v540
  %v579 = vadd.f32 %v383, %v541
  %v580 = vadd.f32 %v389, %v541
  %v581 = vadd.f32 %v396, %v542
  %v582 = vadd.f32 %v402, %v542
  %v583 = vadd.f32 %v409, %v543
  %v584 = vadd.f32 %v415, %v543
  %v585 = vadd.f32 %v422, %v544
  %v586 = vadd.f32 %v428, %v544
  %v587 = vadd.f32 %v435, %v545
  %v588 = vadd.f32 %v441, %v545
  %v589 = vadd.f32 %v448, %v546
  %v590 = vadd.f32 %v454, %v546
  %v591 = vadd.f32 %v461, %v547
  %v592 = vadd.f32 %v467, %v547
  %v593 = vadd.f32 %v474, %v548
  %v594 = vadd.f32 %v480, %v548
  %v595 = vadd.f32 %v487, %v549
  %v596 = vadd.f32 %v493, %v549
  %v597 = vadd.f32 %v500, %v550
  %v598 = vadd.f32 %v506, %v550
  %vm599 = vcmp.ge.f32.partialorder %v567, 0.0
  %vm600 = vcmp.ge.f32.partialorder %v568, 0.0
  %vm601 = vcmp.ge.f32.partialorder %v569, 0.0
  %vm602 = vcmp.ge.f32.partialorder %v570, 0.0
  %vm603 = vcmp.ge.f32.partialorder %v571, 0.0
  %vm604 = vcmp.ge.f32.partialorder %v572, 0.0
  %vm605 = vcmp.ge.f32.partialorder %v573, 0.0
  %vm606 = vcmp.ge.f32.partialorder %v574, 0.0
  %vm607 = vcmp.ge.f32.partialorder %v575, 0.0
  %vm608 = vcmp.ge.f32.partialorder %v576, 0.0
  %vm609 = vcmp.ge.f32.partialorder %v577, 0.0
  %vm610 = vcmp.ge.f32.partialorder %v578, 0.0
  %vm611 = vcmp.ge.f32.partialorder %v579, 0.0
  %vm612 = vcmp.ge.f32.partialorder %v580, 0.0
  %vm613 = vcmp.ge.f32.partialorder %v581, 0.0
  %vm614 = vcmp.ge.f32.partialorder %v582, 0.0
  %vm615 = vcmp.ge.f32.partialorder %v583, 0.0
  %vm616 = vcmp.ge.f32.partialorder %v584, 0.0
  %vm617 = vcmp.ge.f32.partialorder %v585, 0.0
  %vm618 = vcmp.ge.f32.partialorder %v586, 0.0
  %vm619 = vcmp.ge.f32.partialorder %v587, 0.0
  %vm620 = vcmp.ge.f32.partialorder %v588, 0.0
  %vm621 = vcmp.ge.f32.partialorder %v589, 0.0
  %vm622 = vcmp.ge.f32.partialorder %v590, 0.0
  %vm623 = vcmp.ge.f32.partialorder %v591, 0.0
  %vm624 = vcmp.ge.f32.partialorder %v592, 0.0
  %vm625 = vcmp.ge.f32.partialorder %v593, 0.0
  %vm626 = vcmp.ge.f32.partialorder %v594, 0.0
  %vm627 = vcmp.ge.f32.partialorder %v595, 0.0
  %vm628 = vcmp.ge.f32.partialorder %v596, 0.0
  %vm629 = vcmp.ge.f32.partialorder %v597, 0.0
  %vm630 = vcmp.ge.f32.partialorder %v598, 0.0
  %v631 = vmul.f32 %v567, 0.2
  %v632 = vmul.f32 %v568, 0.2
  %v633 = vmul.f32 %v569, 0.2
  %v634 = vmul.f32 %v570, 0.2
  %v635 = vmul.f32 %v571, 0.2
  %v636 = vmul.f32 %v572, 0.2
  %v637 = vmul.f32 %v573, 0.2
  %v638 = vmul.f32 %v574, 0.2
  %v639 = vmul.f32 %v575, 0.2
  %v640 = vmul.f32 %v576, 0.2
  %v641 = vmul.f32 %v577, 0.2
  %v642 = vmul.f32 %v578, 0.2
  %v643 = vmul.f32 %v579, 0.2
  %v644 = vmul.f32 %v580, 0.2
  %v645 = vmul.f32 %v581, 0.2
  %v646 = vmul.f32 %v582, 0.2
  %v647 = vmul.f32 %v583, 0.2
  %v648 = vmul.f32 %v584, 0.2
  %v649 = vmul.f32 %v585, 0.2
  %v650 = vmul.f32 %v586, 0.2
  %v651 = vmul.f32 %v587, 0.2
  %v652 = vmul.f32 %v588, 0.2
  %v653 = vmul.f32 %v589, 0.2
  %v654 = vmul.f32 %v590, 0.2
  %v655 = vmul.f32 %v591, 0.2
  %v656 = vmul.f32 %v592, 0.2
  %v657 = vmul.f32 %v593, 0.2
  %v658 = vmul.f32 %v594, 0.2
  %v659 = vmul.f32 %v595, 0.2
  %v660 = vmul.f32 %v596, 0.2
  %v661 = vmul.f32 %v597, 0.2
  %v662 = vmul.f32 %v598, 0.2
  %v663 = vsel %vm599, %v567, %v631
  %v664 = vsel %vm600, %v568, %v632
  %v665 = vsel %vm601, %v569, %v633
  %v666 = vsel %vm602, %v570, %v634
  %v667 = vsel %vm603, %v571, %v635
  %v668 = vsel %vm604, %v572, %v636
  %v669 = vsel %vm605, %v573, %v637
  %v670 = vsel %vm606, %v574, %v638
  %v671 = vsel %vm607, %v575, %v639
  %v672 = vsel %vm608, %v576, %v640
  %v673 = vsel %vm609, %v577, %v641
  %v674 = vsel %vm610, %v578, %v642
  %v675 = vsel %vm611, %v579, %v643
  %v676 = vsel %vm612, %v580, %v644
  %v677 = vsel %vm613, %v581, %v645
  %v678 = vsel %vm614, %v582, %v646
  %v679 = vsel %vm615, %v583, %v647
  %v680 = vsel %vm616, %v584, %v648
  %v681 = vsel %vm617, %v585, %v649
  %v682 = vsel %vm618, %v586, %v650
  %v683 = vsel %vm619, %v587, %v651
  %v684 = vsel %vm620, %v588, %v652
  %v685 = vsel %vm621, %v589, %v653
  %v686 = vsel %vm622, %v590, %v654
  %v687 = vsel %vm623, %v591, %v655
  %v688 = vsel %vm624, %v592, %v656
  %v689 = vsel %vm625, %v593, %v657
  %v690 = vsel %vm626, %v594, %v658
  %v691 = vsel %vm627, %v595, %v659
  %v692 = vsel %vm628, %v596, %v660
  %v693 = vsel %vm629, %v597, %v661
  %v694 = vsel %vm630, %v598, %v662
  %v695 = vld [vmem:[%s1] sm:$0xff]
  %v696 = vld [vmem:[%s1 + $0x8] sm:$0xff]
  %v697 = vld [vmem:[%s1 + $0x10] sm:$0xff]
  %v698 = vld [vmem:[%s1 + $0x18] sm:$0xff]
  %v699 = vld [vmem:[%s1 + $0x20] sm:$0xff]
  %v700 = vld [vmem:[%s1 + $0x28] sm:$0xff]
  %v701 = vld [vmem:[%s1 + $0x30] sm:$0xff]
  %v702 = vld [vmem:[%s1 + $0x38] sm:$0xff]
  %v703 = vadd.f32 %v663, %v695
  %v704 = vadd.f32 %v664, %v696
  %v705 = vadd.f32 %v665, %v695
  %v706 = vadd.f32 %v666, %v696
  %v707 = vadd.f32 %v667, %v695
  %v708 = vadd.f32 %v668, %v696
  %v709 = vadd.f32 %v669, %v695
  %v710 = vadd.f32 %v670, %v696
  %v711 = vadd.f32 %v671, %v697
  %v712 = vadd.f32 %v672, %v698
  %v713 = vadd.f32 %v673, %v697
  %v714 = vadd.f32 %v674, %v698
  %v715 = vadd.f32 %v675, %v697
  %v716 = vadd.f32 %v676, %v698
  %v717 = vadd.f32 %v677, %v697
  %v718 = vadd.f32 %v678, %v698
  %v719 = vadd.f32 %v679, %v699
  %v720 = vadd.f32 %v680, %v700
  %v721 = vadd.f32 %v681, %v699
  %v722 = vadd.f32 %v682, %v700
  %v723 = vadd.f32 %v683, %v699
  %v724 = vadd.f32 %v684, %v700
  %v725 = vadd.f32 %v685, %v699
  %v726 = vadd.f32 %v686, %v700
  %v727 = vadd.f32 %v687, %v701
  %v728 = vadd.f32 %v688, %v702
  %v729 = vadd.f32 %v689, %v701
  %v730 = vadd.f32 %v690, %v702
  %v731 = vadd.f32 %v691, %v701
  %v732 = vadd.f32 %v692, %v702
  %v733 = vadd.f32 %v693, %v701
  %v734 = vadd.f32 %v694, %v702
  %vm735 = vcmask 130048
  %v736 = vsel %vm735, %v703, -inf
  %737 = vmax.xlane.f32.xlu0 %v736
  %v738 = vpop.xlane.xlu0 %737
  %v739 = vsel %vm735, %v704, -inf
  %740 = vmax.xlane.f32.xlu0 %v739
  %v741 = vpop.xlane.xlu0 %740
  %v742 = vsel %vm735, %v705, -inf
  %743 = vmax.xlane.f32.xlu0 %v742
  %v744 = vpop.xlane.xlu0 %743
  %v745 = vsel %vm735, %v706, -inf
  %746 = vmax.xlane.f32.xlu0 %v745
  %v747 = vpop.xlane.xlu0 %746
  %v748 = vsel %vm735, %v707, -inf
  %749 = vmax.xlane.f32.xlu0 %v748
  %v750 = vpop.xlane.xlu0 %749
  %v751 = vsel %vm735, %v708, -inf
  %752 = vmax.xlane.f32.xlu0 %v751
  %v753 = vpop.xlane.xlu0 %752
  %v754 = vsel %vm735, %v709, -inf
  %755 = vmax.xlane.f32.xlu0 %v754
  %v756 = vpop.xlane.xlu0 %755
  %v757 = vsel %vm735, %v710, -inf
  %758 = vmax.xlane.f32.xlu0 %v757
  %v759 = vpop.xlane.xlu0 %758
  %v760 = vsel %vm735, %v711, -inf
  %761 = vmax.xlane.f32.xlu0 %v760
  %v762 = vpop.xlane.xlu0 %761
  %v763 = vsel %vm735, %v712, -inf
  %764 = vmax.xlane.f32.xlu0 %v763
  %v765 = vpop.xlane.xlu0 %764
  %v766 = vsel %vm735, %v713, -inf
  %767 = vmax.xlane.f32.xlu0 %v766
  %v768 = vpop.xlane.xlu0 %767
  %v769 = vsel %vm735, %v714, -inf
  %770 = vmax.xlane.f32.xlu0 %v769
  %v771 = vpop.xlane.xlu0 %770
  %v772 = vsel %vm735, %v715, -inf
  %773 = vmax.xlane.f32.xlu0 %v772
  %v774 = vpop.xlane.xlu0 %773
  %v775 = vsel %vm735, %v716, -inf
  %776 = vmax.xlane.f32.xlu0 %v775
  %v777 = vpop.xlane.xlu0 %776
  %v778 = vsel %vm735, %v717, -inf
  %779 = vmax.xlane.f32.xlu0 %v778
  %v780 = vpop.xlane.xlu0 %779
  %v781 = vsel %vm735, %v718, -inf
  %782 = vmax.xlane.f32.xlu0 %v781
  %v783 = vpop.xlane.xlu0 %782
  %v784 = vsel %vm735, %v719, -inf
  %785 = vmax.xlane.f32.xlu0 %v784
  %v786 = vpop.xlane.xlu0 %785
  %v787 = vsel %vm735, %v720, -inf
  %788 = vmax.xlane.f32.xlu0 %v787
  %v789 = vpop.xlane.xlu0 %788
  %v790 = vsel %vm735, %v721, -inf
  %791 = vmax.xlane.f32.xlu0 %v790
  %v792 = vpop.xlane.xlu0 %791
  %v793 = vsel %vm735, %v722, -inf
  %794 = vmax.xlane.f32.xlu0 %v793
  %v795 = vpop.xlane.xlu0 %794
  %v796 = vsel %vm735, %v723, -inf
  %797 = vmax.xlane.f32.xlu0 %v796
  %v798 = vpop.xlane.xlu0 %797
  %v799 = vsel %vm735, %v724, -inf
  %800 = vmax.xlane.f32.xlu0 %v799
  %v801 = vpop.xlane.xlu0 %800
  %v802 = vsel %vm735, %v725, -inf
  %803 = vmax.xlane.f32.xlu0 %v802
  %v804 = vpop.xlane.xlu0 %803
  %v805 = vsel %vm735, %v726, -inf
  %806 = vmax.xlane.f32.xlu0 %v805
  %v807 = vpop.xlane.xlu0 %806
  %v808 = vsel %vm735, %v727, -inf
  %809 = vmax.xlane.f32.xlu0 %v808
  %v810 = vpop.xlane.xlu0 %809
  %v811 = vsel %vm735, %v728, -inf
  %812 = vmax.xlane.f32.xlu0 %v811
  %v813 = vpop.xlane.xlu0 %812
  %v814 = vsel %vm735, %v729, -inf
  %815 = vmax.xlane.f32.xlu0 %v814
  %v816 = vpop.xlane.xlu0 %815
  %v817 = vsel %vm735, %v730, -inf
  %818 = vmax.xlane.f32.xlu0 %v817
  %v819 = vpop.xlane.xlu0 %818
  %v820 = vsel %vm735, %v731, -inf
  %821 = vmax.xlane.f32.xlu0 %v820
  %v822 = vpop.xlane.xlu0 %821
  %v823 = vsel %vm735, %v732, -inf
  %824 = vmax.xlane.f32.xlu0 %v823
  %v825 = vpop.xlane.xlu0 %824
  %v826 = vsel %vm735, %v733, -inf
  %827 = vmax.xlane.f32.xlu0 %v826
  %v828 = vpop.xlane.xlu0 %827
  %v829 = vsel %vm735, %v734, -inf
  %830 = vmax.xlane.f32.xlu0 %v829
  %v831 = vpop.xlane.xlu0 %830
  %v832 = vsub.f32 %v703, %v738
  %v833 = vsub.f32 %v704, %v741
  %v834 = vsub.f32 %v705, %v744
  %v835 = vsub.f32 %v706, %v747
  %v836 = vsub.f32 %v707, %v750
  %v837 = vsub.f32 %v708, %v753
  %v838 = vsub.f32 %v709, %v756
  %v839 = vsub.f32 %v710, %v759
  %v840 = vsub.f32 %v711, %v762
  %v841 = vsub.f32 %v712, %v765
  %v842 = vsub.f32 %v713, %v768
  %v843 = vsub.f32 %v714, %v771
  %v844 = vsub.f32 %v715, %v774
  %v845 = vsub.f32 %v716, %v777
  %v846 = vsub.f32 %v717, %v780
  %v847 = vsub.f32 %v718, %v783
  %v848 = vsub.f32 %v719, %v786
  %v849 = vsub.f32 %v720, %v789
  %v850 = vsub.f32 %v721, %v792
  %v851 = vsub.f32 %v722, %v795
  %v852 = vsub.f32 %v723, %v798
  %v853 = vsub.f32 %v724, %v801
  %v854 = vsub.f32 %v725, %v804
  %v855 = vsub.f32 %v726, %v807
  %v856 = vsub.f32 %v727, %v810
  %v857 = vsub.f32 %v728, %v813
  %v858 = vsub.f32 %v729, %v816
  %v859 = vsub.f32 %v730, %v819
  %v860 = vsub.f32 %v731, %v822
  %v861 = vsub.f32 %v732, %v825
  %v862 = vsub.f32 %v733, %v828
  %v863 = vsub.f32 %v734, %v831
  %v864 = vmul.f32 %v832, 1.442695
  %v865 = vpow.pop %v864
  %v866 = vmul.f32 %v833, 1.442695
  %v867 = vpow.pop %v866
  %v868 = vmul.f32 %v834, 1.442695
  %v869 = vpow.pop %v868
  %v870 = vmul.f32 %v835, 1.442695
  %v871 = vpow.pop %v870
  %v872 = vmul.f32 %v836, 1.442695
  %v873 = vpow.pop %v872
  %v874 = vmul.f32 %v837, 1.442695
  %v875 = vpow.pop %v874
  %v876 = vmul.f32 %v838, 1.442695
  %v877 = vpow.pop %v876
  %v878 = vmul.f32 %v839, 1.442695
  %v879 = vpow.pop %v878
  %v880 = vmul.f32 %v840, 1.442695
  %v881 = vpow.pop %v880
  %v882 = vmul.f32 %v841, 1.442695
  %v883 = vpow.pop %v882
  %v884 = vmul.f32 %v842, 1.442695
  %v885 = vpow.pop %v884
  %v886 = vmul.f32 %v843, 1.442695
  %v887 = vpow.pop %v886
  %v888 = vmul.f32 %v844, 1.442695
  %v889 = vpow.pop %v888
  %v890 = vmul.f32 %v845, 1.442695
  %v891 = vpow.pop %v890
  %v892 = vmul.f32 %v846, 1.442695
  %v893 = vpow.pop %v892
  %v894 = vmul.f32 %v847, 1.442695
  %v895 = vpow.pop %v894
  %v896 = vmul.f32 %v848, 1.442695
  %v897 = vpow.pop %v896
  %v898 = vmul.f32 %v849, 1.442695
  %v899 = vpow.pop %v898
  %v900 = vmul.f32 %v850, 1.442695
  %v901 = vpow.pop %v900
  %v902 = vmul.f32 %v851, 1.442695
  %v903 = vpow.pop %v902
  %v904 = vmul.f32 %v852, 1.442695
  %v905 = vpow.pop %v904
  %v906 = vmul.f32 %v853, 1.442695
  %v907 = vpow.pop %v906
  %v908 = vmul.f32 %v854, 1.442695
  %v909 = vpow.pop %v908
  %v910 = vmul.f32 %v855, 1.442695
  %v911 = vpow.pop %v910
  %v912 = vmul.f32 %v856, 1.442695
  %v913 = vpow.pop %v912
  %v914 = vmul.f32 %v857, 1.442695
  %v915 = vpow.pop %v914
  %v916 = vmul.f32 %v858, 1.442695
  %v917 = vpow.pop %v916
  %v918 = vmul.f32 %v859, 1.442695
  %v919 = vpow.pop %v918
  %v920 = vmul.f32 %v860, 1.442695
  %v921 = vpow.pop %v920
  %v922 = vmul.f32 %v861, 1.442695
  %v923 = vpow.pop %v922
  %v924 = vmul.f32 %v862, 1.442695
  %v925 = vpow.pop %v924
  %v926 = vmul.f32 %v863, 1.442695
  %v927 = vpow.pop %v926
  %v928 = vsel %vm735, %v865, 0.0
  %929 = vadd.xlane.f32.xlu0 %v928
  %v930 = vpop.xlane.xlu0 %929
  %v931 = vsel %vm735, %v867, 0.0
  %932 = vadd.xlane.f32.xlu0 %v931
  %v933 = vpop.xlane.xlu0 %932
  %v934 = vsel %vm735, %v869, 0.0
  %935 = vadd.xlane.f32.xlu0 %v934
  %v936 = vpop.xlane.xlu0 %935
  %v937 = vsel %vm735, %v871, 0.0
  %938 = vadd.xlane.f32.xlu0 %v937
  %v939 = vpop.xlane.xlu0 %938
  %v940 = vsel %vm735, %v873, 0.0
  %941 = vadd.xlane.f32.xlu0 %v940
  %v942 = vpop.xlane.xlu0 %941
  %v943 = vsel %vm735, %v875, 0.0
  %944 = vadd.xlane.f32.xlu0 %v943
  %v945 = vpop.xlane.xlu0 %944
  %v946 = vsel %vm735, %v877, 0.0
  %947 = vadd.xlane.f32.xlu0 %v946
  %v948 = vpop.xlane.xlu0 %947
  %v949 = vsel %vm735, %v879, 0.0
  %950 = vadd.xlane.f32.xlu0 %v949
  %v951 = vpop.xlane.xlu0 %950
  %v952 = vsel %vm735, %v881, 0.0
  %953 = vadd.xlane.f32.xlu0 %v952
  %v954 = vpop.xlane.xlu0 %953
  %v955 = vsel %vm735, %v883, 0.0
  %956 = vadd.xlane.f32.xlu0 %v955
  %v957 = vpop.xlane.xlu0 %956
  %v958 = vsel %vm735, %v885, 0.0
  %959 = vadd.xlane.f32.xlu0 %v958
  %v960 = vpop.xlane.xlu0 %959
  %v961 = vsel %vm735, %v887, 0.0
  %962 = vadd.xlane.f32.xlu0 %v961
  %v963 = vpop.xlane.xlu0 %962
  %v964 = vsel %vm735, %v889, 0.0
  %965 = vadd.xlane.f32.xlu0 %v964
  %v966 = vpop.xlane.xlu0 %965
  %v967 = vsel %vm735, %v891, 0.0
  %968 = vadd.xlane.f32.xlu0 %v967
  %v969 = vpop.xlane.xlu0 %968
  %v970 = vsel %vm735, %v893, 0.0
  %971 = vadd.xlane.f32.xlu0 %v970
  %v972 = vpop.xlane.xlu0 %971
  %v973 = vsel %vm735, %v895, 0.0
  %974 = vadd.xlane.f32.xlu0 %v973
  %v975 = vpop.xlane.xlu0 %974
  %v976 = vsel %vm735, %v897, 0.0
  %977 = vadd.xlane.f32.xlu0 %v976
  %v978 = vpop.xlane.xlu0 %977
  %v979 = vsel %vm735, %v899, 0.0
  %980 = vadd.xlane.f32.xlu0 %v979
  %v981 = vpop.xlane.xlu0 %980
  %v982 = vsel %vm735, %v901, 0.0
  %983 = vadd.xlane.f32.xlu0 %v982
  %v984 = vpop.xlane.xlu0 %983
  %v985 = vsel %vm735, %v903, 0.0
  %986 = vadd.xlane.f32.xlu0 %v985
  %v987 = vpop.xlane.xlu0 %986
  %v988 = vsel %vm735, %v905, 0.0
  %989 = vadd.xlane.f32.xlu0 %v988
  %v990 = vpop.xlane.xlu0 %989
  %v991 = vsel %vm735, %v907, 0.0
  %992 = vadd.xlane.f32.xlu0 %v991
  %v993 = vpop.xlane.xlu0 %992
  %v994 = vsel %vm735, %v909, 0.0
  %995 = vadd.xlane.f32.xlu0 %v994
  %v996 = vpop.xlane.xlu0 %995
  %v997 = vsel %vm735, %v911, 0.0
  %998 = vadd.xlane.f32.xlu0 %v997
  %v999 = vpop.xlane.xlu0 %998
  %v1000 = vsel %vm735, %v913, 0.0
  %1001 = vadd.xlane.f32.xlu0 %v1000
  %v1002 = vpop.xlane.xlu0 %1001
  %v1003 = vsel %vm735, %v915, 0.0
  %1004 = vadd.xlane.f32.xlu0 %v1003
  %v1005 = vpop.xlane.xlu0 %1004
  %v1006 = vsel %vm735, %v917, 0.0
  %1007 = vadd.xlane.f32.xlu0 %v1006
  %v1008 = vpop.xlane.xlu0 %1007
  %v1009 = vsel %vm735, %v919, 0.0
  %1010 = vadd.xlane.f32.xlu0 %v1009
  %v1011 = vpop.xlane.xlu0 %1010
  %v1012 = vsel %vm735, %v921, 0.0
  %1013 = vadd.xlane.f32.xlu0 %v1012
  %v1014 = vpop.xlane.xlu0 %1013
  %v1015 = vsel %vm735, %v923, 0.0
  %1016 = vadd.xlane.f32.xlu0 %v1015
  %v1017 = vpop.xlane.xlu0 %1016
  %v1018 = vsel %vm735, %v925, 0.0
  %1019 = vadd.xlane.f32.xlu0 %v1018
  %v1020 = vpop.xlane.xlu0 %1019
  %v1021 = vsel %vm735, %v927, 0.0
  %1022 = vadd.xlane.f32.xlu0 %v1021
  %v1023 = vpop.xlane.xlu0 %1022
  %v1024 = vrcp.pop %v930
  %v1025 = vrcp.pop %v933
  %v1026 = vrcp.pop %v936
  %v1027 = vrcp.pop %v939
  %v1028 = vrcp.pop %v942
  %v1029 = vrcp.pop %v945
  %v1030 = vrcp.pop %v948
  %v1031 = vrcp.pop %v951
  %v1032 = vrcp.pop %v954
  %v1033 = vrcp.pop %v957
  %v1034 = vrcp.pop %v960
  %v1035 = vrcp.pop %v963
  %v1036 = vrcp.pop %v966
  %v1037 = vrcp.pop %v969
  %v1038 = vrcp.pop %v972
  %v1039 = vrcp.pop %v975
  %v1040 = vrcp.pop %v978
  %v1041 = vrcp.pop %v981
  %v1042 = vrcp.pop %v984
  %v1043 = vrcp.pop %v987
  %v1044 = vrcp.pop %v990
  %v1045 = vrcp.pop %v993
  %v1046 = vrcp.pop %v996
  %v1047 = vrcp.pop %v999
  %v1048 = vrcp.pop %v1002
  %v1049 = vrcp.pop %v1005
  %v1050 = vrcp.pop %v1008
  %v1051 = vrcp.pop %v1011
  %v1052 = vrcp.pop %v1014
  %v1053 = vrcp.pop %v1017
  %v1054 = vrcp.pop %v1020
  %v1055 = vrcp.pop %v1023
  %v1056 = vmul.f32 %v865, %v1024
  %v1057 = vmul.f32 %v867, %v1025
  %v1058 = vmul.f32 %v869, %v1026
  %v1059 = vmul.f32 %v871, %v1027
  %v1060 = vmul.f32 %v873, %v1028
  %v1061 = vmul.f32 %v875, %v1029
  %v1062 = vmul.f32 %v877, %v1030
  %v1063 = vmul.f32 %v879, %v1031
  %v1064 = vmul.f32 %v881, %v1032
  %v1065 = vmul.f32 %v883, %v1033
  %v1066 = vmul.f32 %v885, %v1034
  %v1067 = vmul.f32 %v887, %v1035
  %v1068 = vmul.f32 %v889, %v1036
  %v1069 = vmul.f32 %v891, %v1037
  %v1070 = vmul.f32 %v893, %v1038
  %v1071 = vmul.f32 %v895, %v1039
  %v1072 = vmul.f32 %v897, %v1040
  %v1073 = vmul.f32 %v899, %v1041
  %v1074 = vmul.f32 %v901, %v1042
  %v1075 = vmul.f32 %v903, %v1043
  %v1076 = vmul.f32 %v905, %v1044
  %v1077 = vmul.f32 %v907, %v1045
  %v1078 = vmul.f32 %v909, %v1046
  %v1079 = vmul.f32 %v911, %v1047
  %v1080 = vmul.f32 %v913, %v1048
  %v1081 = vmul.f32 %v915, %v1049
  %v1082 = vmul.f32 %v917, %v1050
  %v1083 = vmul.f32 %v919, %v1051
  %v1084 = vmul.f32 %v921, %v1052
  %v1085 = vmul.f32 %v923, %v1053
  %v1086 = vmul.f32 %v925, %v1054
  %v1087 = vmul.f32 %v927, %v1055
  %1088 = vrot.lane.b32.xlu0 %v78, 120
  %v1089 = vpop.permute.xlu0 %1088
  %1090 = vrot.lane.b32.xlu0 %v81, 120
  %v1091 = vpop.permute.xlu0 %1090
  %1092 = vrot.lane.b32.xlu0 %v84, 120
  %v1093 = vpop.permute.xlu0 %1092
  %1094 = vrot.lane.b32.xlu0 %v87, 120
  %v1095 = vpop.permute.xlu0 %1094
  %1096 = vrot.lane.b32.xlu0 %v90, 120
  %v1097 = vpop.permute.xlu0 %1096
  %1098 = vrot.lane.b32.xlu0 %v93, 120
  %v1099 = vpop.permute.xlu0 %1098
  %1100 = vrot.lane.b32.xlu0 %v96, 120
  %v1101 = vpop.permute.xlu0 %1100
  %1102 = vrot.lane.b32.xlu0 %v99, 120
  %v1103 = vpop.permute.xlu0 %1102
  %1112 = vrot.lane.b32.xlu0 %v78, 112
  %v1113 = vpop.permute.xlu0 %1112
  %1114 = vrot.lane.b32.xlu0 %v81, 112
  %v1115 = vpop.permute.xlu0 %1114
  %1116 = vrot.lane.b32.xlu0 %v84, 112
  %v1117 = vpop.permute.xlu0 %1116
  %1118 = vrot.lane.b32.xlu0 %v87, 112
  %v1119 = vpop.permute.xlu0 %1118
  %1120 = vrot.lane.b32.xlu0 %v90, 112
  %v1121 = vpop.permute.xlu0 %1120
  %1122 = vrot.lane.b32.xlu0 %v93, 112
  %v1123 = vpop.permute.xlu0 %1122
  %1124 = vrot.lane.b32.xlu0 %v96, 112
  %v1125 = vpop.permute.xlu0 %1124
  %1126 = vrot.lane.b32.xlu0 %v99, 112
  %v1127 = vpop.permute.xlu0 %1126
  %1136 = vrot.lane.b32.xlu0 %v78, 104
  %v1137 = vpop.permute.xlu0 %1136
  %1138 = vrot.lane.b32.xlu0 %v81, 104
  %v1139 = vpop.permute.xlu0 %1138
  %1140 = vrot.lane.b32.xlu0 %v84, 104
  %v1141 = vpop.permute.xlu0 %1140
  %1142 = vrot.lane.b32.xlu0 %v87, 104
  %v1143 = vpop.permute.xlu0 %1142
  %1144 = vrot.lane.b32.xlu0 %v90, 104
  %v1145 = vpop.permute.xlu0 %1144
  %1146 = vrot.lane.b32.xlu0 %v93, 104
  %v1147 = vpop.permute.xlu0 %1146
  %1148 = vrot.lane.b32.xlu0 %v96, 104
  %v1149 = vpop.permute.xlu0 %1148
  %1150 = vrot.lane.b32.xlu0 %v99, 104
  %v1151 = vpop.permute.xlu0 %1150
  %v1161 = vsel %vm735, %v1056, 0
  %v1164 = vsel %vm735, %v1057, 0
  %1166 = vmatpush.msra.mxu0 0.0
  %1167 = vmatpush.msra.mxu0 0.0
  %1168 = vmatpush.msra.mxu0 0.0
  %1169 = vmatpush.msra.mxu0 0.0
  %1170 = vmatpush.msra.mxu0 0.0
  %1171 = vmatpush.msra.mxu0 0.0
  %1172 = vmatpush.msra.mxu0 0.0
  %1173 = vmatpush.msra.mxu0 0.0
  %1174 = vmatpush.msra.mxu0 0.0
  %1175 = vmatpush.msra.mxu0 0.0
  %1176 = vmatpush.msra.mxu0 0.0
  %1177 = vmatpush.msra.mxu0 0.0
  %1178 = vmatpush.msra.mxu0 0.0
  %1179 = vmatpush.msra.mxu0 0.0
  %1180 = vmatpush.msra.mxu0 %v81
  %1181 = vmatpush.msra.mxu0 %v78
  %1182 = vmatmul.f32.gmra.mxu0 %v1161
  %v1183 = vpop.f32.mrf.mxu0
  %v1184 = vadd.f32 0.0, %v1183
  %1185 = vmatmul.f32.gmra.mxu0 %v1164
  %v1186 = vpop.f32.mrf.mxu0
  %v1187 = vadd.f32 0.0, %v1186
  %1188 = vdwg.mxu0
  %v1190 = vsel %vm735, %v1058, 0
  %v1193 = vsel %vm735, %v1059, 0
  %1195 = vmatpush.msra.mxu0 0.0
  %1196 = vmatpush.msra.mxu0 0.0
  %1197 = vmatpush.msra.mxu0 0.0
  %1198 = vmatpush.msra.mxu0 0.0
  %1199 = vmatpush.msra.mxu0 0.0
  %1200 = vmatpush.msra.mxu0 0.0
  %1201 = vmatpush.msra.mxu0 0.0
  %1202 = vmatpush.msra.mxu0 0.0
  %1203 = vmatpush.msra.mxu0 0.0
  %1204 = vmatpush.msra.mxu0 0.0
  %1205 = vmatpush.msra.mxu0 0.0
  %1206 = vmatpush.msra.mxu0 0.0
  %1207 = vmatpush.msra.mxu0 0.0
  %1208 = vmatpush.msra.mxu0 0.0
  %1209 = vmatpush.msra.mxu0 %v1091
  %1210 = vmatpush.msra.mxu0 %v1089
  %1211 = vmatmul.f32.gmra.mxu0 %v1190
  %v1212 = vpop.f32.mrf.mxu0
  %v1213 = vadd.f32 0.0, %v1212
  %1214 = vmatmul.f32.gmra.mxu0 %v1193
  %v1215 = vpop.f32.mrf.mxu0
  %v1216 = vadd.f32 0.0, %v1215
  %1217 = vdwg.mxu0
  %v1219 = vsel %vm735, %v1060, 0
  %v1222 = vsel %vm735, %v1061, 0
  %1224 = vmatpush.msra.mxu0 0.0
  %1225 = vmatpush.msra.mxu0 0.0
  %1226 = vmatpush.msra.mxu0 0.0
  %1227 = vmatpush.msra.mxu0 0.0
  %1228 = vmatpush.msra.mxu0 0.0
  %1229 = vmatpush.msra.mxu0 0.0
  %1230 = vmatpush.msra.mxu0 0.0
  %1231 = vmatpush.msra.mxu0 0.0
  %1232 = vmatpush.msra.mxu0 0.0
  %1233 = vmatpush.msra.mxu0 0.0
  %1234 = vmatpush.msra.mxu0 0.0
  %1235 = vmatpush.msra.mxu0 0.0
  %1236 = vmatpush.msra.mxu0 0.0
  %1237 = vmatpush.msra.mxu0 0.0
  %1238 = vmatpush.msra.mxu0 %v1115
  %1239 = vmatpush.msra.mxu0 %v1113
  %1240 = vmatmul.f32.gmra.mxu0 %v1219
  %v1241 = vpop.f32.mrf.mxu0
  %v1242 = vadd.f32 0.0, %v1241
  %1243 = vmatmul.f32.gmra.mxu0 %v1222
  %v1244 = vpop.f32.mrf.mxu0
  %v1245 = vadd.f32 0.0, %v1244
  %1246 = vdwg.mxu0
  %v1248 = vsel %vm735, %v1062, 0
  %v1251 = vsel %vm735, %v1063, 0
  %1253 = vmatpush.msra.mxu0 0.0
  %1254 = vmatpush.msra.mxu0 0.0
  %1255 = vmatpush.msra.mxu0 0.0
  %1256 = vmatpush.msra.mxu0 0.0
  %1257 = vmatpush.msra.mxu0 0.0
  %1258 = vmatpush.msra.mxu0 0.0
  %1259 = vmatpush.msra.mxu0 0.0
  %1260 = vmatpush.msra.mxu0 0.0
  %1261 = vmatpush.msra.mxu0 0.0
  %1262 = vmatpush.msra.mxu0 0.0
  %1263 = vmatpush.msra.mxu0 0.0
  %1264 = vmatpush.msra.mxu0 0.0
  %1265 = vmatpush.msra.mxu0 0.0
  %1266 = vmatpush.msra.mxu0 0.0
  %1267 = vmatpush.msra.mxu0 %v1139
  %1268 = vmatpush.msra.mxu0 %v1137
  %1269 = vmatmul.f32.gmra.mxu0 %v1248
  %v1270 = vpop.f32.mrf.mxu0
  %v1271 = vadd.f32 0.0, %v1270
  %1272 = vmatmul.f32.gmra.mxu0 %v1251
  %v1273 = vpop.f32.mrf.mxu0
  %v1274 = vadd.f32 0.0, %v1273
  %1275 = vdwg.mxu0
  %v1277 = vsel %vm735, %v1064, 0
  %v1280 = vsel %vm735, %v1065, 0
  %1282 = vmatpush.msra.mxu0 0.0
  %1283 = vmatpush.msra.mxu0 0.0
  %1284 = vmatpush.msra.mxu0 0.0
  %1285 = vmatpush.msra.mxu0 0.0
  %1286 = vmatpush.msra.mxu0 0.0
  %1287 = vmatpush.msra.mxu0 0.0
  %1288 = vmatpush.msra.mxu0 0.0
  %1289 = vmatpush.msra.mxu0 0.0
  %1290 = vmatpush.msra.mxu0 0.0
  %1291 = vmatpush.msra.mxu0 0.0
  %1292 = vmatpush.msra.mxu0 0.0
  %1293 = vmatpush.msra.mxu0 0.0
  %1294 = vmatpush.msra.mxu0 0.0
  %1295 = vmatpush.msra.mxu0 0.0
  %1296 = vmatpush.msra.mxu0 %v87
  %1297 = vmatpush.msra.mxu0 %v84
  %1298 = vmatmul.f32.gmra.mxu0 %v1277
  %v1299 = vpop.f32.mrf.mxu0
  %v1300 = vadd.f32 0.0, %v1299
  %1301 = vmatmul.f32.gmra.mxu0 %v1280
  %v1302 = vpop.f32.mrf.mxu0
  %v1303 = vadd.f32 0.0, %v1302
  %1304 = vdwg.mxu0
  %v1306 = vsel %vm735, %v1066, 0
  %v1309 = vsel %vm735, %v1067, 0
  %1311 = vmatpush.msra.mxu0 0.0
  %1312 = vmatpush.msra.mxu0 0.0
  %1313 = vmatpush.msra.mxu0 0.0
  %1314 = vmatpush.msra.mxu0 0.0
  %1315 = vmatpush.msra.mxu0 0.0
  %1316 = vmatpush.msra.mxu0 0.0
  %1317 = vmatpush.msra.mxu0 0.0
  %1318 = vmatpush.msra.mxu0 0.0
  %1319 = vmatpush.msra.mxu0 0.0
  %1320 = vmatpush.msra.mxu0 0.0
  %1321 = vmatpush.msra.mxu0 0.0
  %1322 = vmatpush.msra.mxu0 0.0
  %1323 = vmatpush.msra.mxu0 0.0
  %1324 = vmatpush.msra.mxu0 0.0
  %1325 = vmatpush.msra.mxu0 %v1095
  %1326 = vmatpush.msra.mxu0 %v1093
  %1327 = vmatmul.f32.gmra.mxu0 %v1306
  %v1328 = vpop.f32.mrf.mxu0
  %v1329 = vadd.f32 0.0, %v1328
  %1330 = vmatmul.f32.gmra.mxu0 %v1309
  %v1331 = vpop.f32.mrf.mxu0
  %v1332 = vadd.f32 0.0, %v1331
  %1333 = vdwg.mxu0
  %v1335 = vsel %vm735, %v1068, 0
  %v1338 = vsel %vm735, %v1069, 0
  %1340 = vmatpush.msra.mxu0 0.0
  %1341 = vmatpush.msra.mxu0 0.0
  %1342 = vmatpush.msra.mxu0 0.0
  %1343 = vmatpush.msra.mxu0 0.0
  %1344 = vmatpush.msra.mxu0 0.0
  %1345 = vmatpush.msra.mxu0 0.0
  %1346 = vmatpush.msra.mxu0 0.0
  %1347 = vmatpush.msra.mxu0 0.0
  %1348 = vmatpush.msra.mxu0 0.0
  %1349 = vmatpush.msra.mxu0 0.0
  %1350 = vmatpush.msra.mxu0 0.0
  %1351 = vmatpush.msra.mxu0 0.0
  %1352 = vmatpush.msra.mxu0 0.0
  %1353 = vmatpush.msra.mxu0 0.0
  %1354 = vmatpush.msra.mxu0 %v1119
  %1355 = vmatpush.msra.mxu0 %v1117
  %1356 = vmatmul.f32.gmra.mxu0 %v1335
  %v1357 = vpop.f32.mrf.mxu0
  %v1358 = vadd.f32 0.0, %v1357
  %1359 = vmatmul.f32.gmra.mxu0 %v1338
  %v1360 = vpop.f32.mrf.mxu0
  %v1361 = vadd.f32 0.0, %v1360
  %1362 = vdwg.mxu0
  %v1364 = vsel %vm735, %v1070, 0
  %v1367 = vsel %vm735, %v1071, 0
  %1369 = vmatpush.msra.mxu0 0.0
  %1370 = vmatpush.msra.mxu0 0.0
  %1371 = vmatpush.msra.mxu0 0.0
  %1372 = vmatpush.msra.mxu0 0.0
  %1373 = vmatpush.msra.mxu0 0.0
  %1374 = vmatpush.msra.mxu0 0.0
  %1375 = vmatpush.msra.mxu0 0.0
  %1376 = vmatpush.msra.mxu0 0.0
  %1377 = vmatpush.msra.mxu0 0.0
  %1378 = vmatpush.msra.mxu0 0.0
  %1379 = vmatpush.msra.mxu0 0.0
  %1380 = vmatpush.msra.mxu0 0.0
  %1381 = vmatpush.msra.mxu0 0.0
  %1382 = vmatpush.msra.mxu0 0.0
  %1383 = vmatpush.msra.mxu0 %v1143
  %1384 = vmatpush.msra.mxu0 %v1141
  %1385 = vmatmul.f32.gmra.mxu0 %v1364
  %v1386 = vpop.f32.mrf.mxu0
  %v1387 = vadd.f32 0.0, %v1386
  %1388 = vmatmul.f32.gmra.mxu0 %v1367
  %v1389 = vpop.f32.mrf.mxu0
  %v1390 = vadd.f32 0.0, %v1389
  %1391 = vdwg.mxu0
  %v1393 = vsel %vm735, %v1072, 0
  %v1396 = vsel %vm735, %v1073, 0
  %1398 = vmatpush.msra.mxu0 0.0
  %1399 = vmatpush.msra.mxu0 0.0
  %1400 = vmatpush.msra.mxu0 0.0
  %1401 = vmatpush.msra.mxu0 0.0
  %1402 = vmatpush.msra.mxu0 0.0
  %1403 = vmatpush.msra.mxu0 0.0
  %1404 = vmatpush.msra.mxu0 0.0
  %1405 = vmatpush.msra.mxu0 0.0
  %1406 = vmatpush.msra.mxu0 0.0
  %1407 = vmatpush.msra.mxu0 0.0
  %1408 = vmatpush.msra.mxu0 0.0
  %1409 = vmatpush.msra.mxu0 0.0
  %1410 = vmatpush.msra.mxu0 0.0
  %1411 = vmatpush.msra.mxu0 0.0
  %1412 = vmatpush.msra.mxu0 %v93
  %1413 = vmatpush.msra.mxu0 %v90
  %1414 = vmatmul.f32.gmra.mxu0 %v1393
  %v1415 = vpop.f32.mrf.mxu0
  %v1416 = vadd.f32 0.0, %v1415
  %1417 = vmatmul.f32.gmra.mxu0 %v1396
  %v1418 = vpop.f32.mrf.mxu0
  %v1419 = vadd.f32 0.0, %v1418
  %1420 = vdwg.mxu0
  %v1422 = vsel %vm735, %v1074, 0
  %v1425 = vsel %vm735, %v1075, 0
  %1427 = vmatpush.msra.mxu0 0.0
  %1428 = vmatpush.msra.mxu0 0.0
  %1429 = vmatpush.msra.mxu0 0.0
  %1430 = vmatpush.msra.mxu0 0.0
  %1431 = vmatpush.msra.mxu0 0.0
  %1432 = vmatpush.msra.mxu0 0.0
  %1433 = vmatpush.msra.mxu0 0.0
  %1434 = vmatpush.msra.mxu0 0.0
  %1435 = vmatpush.msra.mxu0 0.0
  %1436 = vmatpush.msra.mxu0 0.0
  %1437 = vmatpush.msra.mxu0 0.0
  %1438 = vmatpush.msra.mxu0 0.0
  %1439 = vmatpush.msra.mxu0 0.0
  %1440 = vmatpush.msra.mxu0 0.0
  %1441 = vmatpush.msra.mxu0 %v1099
  %1442 = vmatpush.msra.mxu0 %v1097
  %1443 = vmatmul.f32.gmra.mxu0 %v1422
  %v1444 = vpop.f32.mrf.mxu0
  %v1445 = vadd.f32 0.0, %v1444
  %1446 = vmatmul.f32.gmra.mxu0 %v1425
  %v1447 = vpop.f32.mrf.mxu0
  %v1448 = vadd.f32 0.0, %v1447
  %1449 = vdwg.mxu0
  %v1451 = vsel %vm735, %v1076, 0
  %v1454 = vsel %vm735, %v1077, 0
  %1456 = vmatpush.msra.mxu0 0.0
  %1457 = vmatpush.msra.mxu0 0.0
  %1458 = vmatpush.msra.mxu0 0.0
  %1459 = vmatpush.msra.mxu0 0.0
  %1460 = vmatpush.msra.mxu0 0.0
  %1461 = vmatpush.msra.mxu0 0.0
  %1462 = vmatpush.msra.mxu0 0.0
  %1463 = vmatpush.msra.mxu0 0.0
  %1464 = vmatpush.msra.mxu0 0.0
  %1465 = vmatpush.msra.mxu0 0.0
  %1466 = vmatpush.msra.mxu0 0.0
  %1467 = vmatpush.msra.mxu0 0.0
  %1468 = vmatpush.msra.mxu0 0.0
  %1469 = vmatpush.msra.mxu0 0.0
  %1470 = vmatpush.msra.mxu0 %v1123
  %1471 = vmatpush.msra.mxu0 %v1121
  %1472 = vmatmul.f32.gmra.mxu0 %v1451
  %v1473 = vpop.f32.mrf.mxu0
  %v1474 = vadd.f32 0.0, %v1473
  %1475 = vmatmul.f32.gmra.mxu0 %v1454
  %v1476 = vpop.f32.mrf.mxu0
  %v1477 = vadd.f32 0.0, %v1476
  %1478 = vdwg.mxu0
  %v1480 = vsel %vm735, %v1078, 0
  %v1483 = vsel %vm735, %v1079, 0
  %1485 = vmatpush.msra.mxu0 0.0
  %1486 = vmatpush.msra.mxu0 0.0
  %1487 = vmatpush.msra.mxu0 0.0
  %1488 = vmatpush.msra.mxu0 0.0
  %1489 = vmatpush.msra.mxu0 0.0
  %1490 = vmatpush.msra.mxu0 0.0
  %1491 = vmatpush.msra.mxu0 0.0
  %1492 = vmatpush.msra.mxu0 0.0
  %1493 = vmatpush.msra.mxu0 0.0
  %1494 = vmatpush.msra.mxu0 0.0
  %1495 = vmatpush.msra.mxu0 0.0
  %1496 = vmatpush.msra.mxu0 0.0
  %1497 = vmatpush.msra.mxu0 0.0
  %1498 = vmatpush.msra.mxu0 0.0
  %1499 = vmatpush.msra.mxu0 %v1147
  %1500 = vmatpush.msra.mxu0 %v1145
  %1501 = vmatmul.f32.gmra.mxu0 %v1480
  %v1502 = vpop.f32.mrf.mxu0
  %v1503 = vadd.f32 0.0, %v1502
  %1504 = vmatmul.f32.gmra.mxu0 %v1483
  %v1505 = vpop.f32.mrf.mxu0
  %v1506 = vadd.f32 0.0, %v1505
  %1507 = vdwg.mxu0
  %v1509 = vsel %vm735, %v1080, 0
  %v1512 = vsel %vm735, %v1081, 0
  %1514 = vmatpush.msra.mxu0 0.0
  %1515 = vmatpush.msra.mxu0 0.0
  %1516 = vmatpush.msra.mxu0 0.0
  %1517 = vmatpush.msra.mxu0 0.0
  %1518 = vmatpush.msra.mxu0 0.0
  %1519 = vmatpush.msra.mxu0 0.0
  %1520 = vmatpush.msra.mxu0 0.0
  %1521 = vmatpush.msra.mxu0 0.0
  %1522 = vmatpush.msra.mxu0 0.0
  %1523 = vmatpush.msra.mxu0 0.0
  %1524 = vmatpush.msra.mxu0 0.0
  %1525 = vmatpush.msra.mxu0 0.0
  %1526 = vmatpush.msra.mxu0 0.0
  %1527 = vmatpush.msra.mxu0 0.0
  %1528 = vmatpush.msra.mxu0 %v99
  %1529 = vmatpush.msra.mxu0 %v96
  %1530 = vmatmul.f32.gmra.mxu0 %v1509
  %v1531 = vpop.f32.mrf.mxu0
  %v1532 = vadd.f32 0.0, %v1531
  %1533 = vmatmul.f32.gmra.mxu0 %v1512
  %v1534 = vpop.f32.mrf.mxu0
  %v1535 = vadd.f32 0.0, %v1534
  %1536 = vdwg.mxu0
  %v1538 = vsel %vm735, %v1082, 0
  %v1541 = vsel %vm735, %v1083, 0
  %1543 = vmatpush.msra.mxu0 0.0
  %1544 = vmatpush.msra.mxu0 0.0
  %1545 = vmatpush.msra.mxu0 0.0
  %1546 = vmatpush.msra.mxu0 0.0
  %1547 = vmatpush.msra.mxu0 0.0
  %1548 = vmatpush.msra.mxu0 0.0
  %1549 = vmatpush.msra.mxu0 0.0
  %1550 = vmatpush.msra.mxu0 0.0
  %1551 = vmatpush.msra.mxu0 0.0
  %1552 = vmatpush.msra.mxu0 0.0
  %1553 = vmatpush.msra.mxu0 0.0
  %1554 = vmatpush.msra.mxu0 0.0
  %1555 = vmatpush.msra.mxu0 0.0
  %1556 = vmatpush.msra.mxu0 0.0
  %1557 = vmatpush.msra.mxu0 %v1103
  %1558 = vmatpush.msra.mxu0 %v1101
  %1559 = vmatmul.f32.gmra.mxu0 %v1538
  %v1560 = vpop.f32.mrf.mxu0
  %v1561 = vadd.f32 0.0, %v1560
  %1562 = vmatmul.f32.gmra.mxu0 %v1541
  %v1563 = vpop.f32.mrf.mxu0
  %v1564 = vadd.f32 0.0, %v1563
  %1565 = vdwg.mxu0
  %v1567 = vsel %vm735, %v1084, 0
  %v1570 = vsel %vm735, %v1085, 0
  %1572 = vmatpush.msra.mxu0 0.0
  %1573 = vmatpush.msra.mxu0 0.0
  %1574 = vmatpush.msra.mxu0 0.0
  %1575 = vmatpush.msra.mxu0 0.0
  %1576 = vmatpush.msra.mxu0 0.0
  %1577 = vmatpush.msra.mxu0 0.0
  %1578 = vmatpush.msra.mxu0 0.0
  %1579 = vmatpush.msra.mxu0 0.0
  %1580 = vmatpush.msra.mxu0 0.0
  %1581 = vmatpush.msra.mxu0 0.0
  %1582 = vmatpush.msra.mxu0 0.0
  %1583 = vmatpush.msra.mxu0 0.0
  %1584 = vmatpush.msra.mxu0 0.0
  %1585 = vmatpush.msra.mxu0 0.0
  %1586 = vmatpush.msra.mxu0 %v1127
  %1587 = vmatpush.msra.mxu0 %v1125
  %1588 = vmatmul.f32.gmra.mxu0 %v1567
  %v1589 = vpop.f32.mrf.mxu0
  %v1590 = vadd.f32 0.0, %v1589
  %1591 = vmatmul.f32.gmra.mxu0 %v1570
  %v1592 = vpop.f32.mrf.mxu0
  %v1593 = vadd.f32 0.0, %v1592
  %1594 = vdwg.mxu0
  %v1596 = vsel %vm735, %v1086, 0
  %v1599 = vsel %vm735, %v1087, 0
  %1601 = vmatpush.msra.mxu0 0.0
  %1602 = vmatpush.msra.mxu0 0.0
  %1603 = vmatpush.msra.mxu0 0.0
  %1604 = vmatpush.msra.mxu0 0.0
  %1605 = vmatpush.msra.mxu0 0.0
  %1606 = vmatpush.msra.mxu0 0.0
  %1607 = vmatpush.msra.mxu0 0.0
  %1608 = vmatpush.msra.mxu0 0.0
  %1609 = vmatpush.msra.mxu0 0.0
  %1610 = vmatpush.msra.mxu0 0.0
  %1611 = vmatpush.msra.mxu0 0.0
  %1612 = vmatpush.msra.mxu0 0.0
  %1613 = vmatpush.msra.mxu0 0.0
  %1614 = vmatpush.msra.mxu0 0.0
  %1615 = vmatpush.msra.mxu0 %v1151
  %1616 = vmatpush.msra.mxu0 %v1149
  %1617 = vmatmul.f32.gmra.mxu0 %v1596
  %v1618 = vpop.f32.mrf.mxu0
  %v1619 = vadd.f32 0.0, %v1618
  %1620 = vmatmul.f32.gmra.mxu0 %v1599
  %v1621 = vpop.f32.mrf.mxu0
  %v1622 = vadd.f32 0.0, %v1621
  %1623 = vdwg.mxu0
  %1632 = vrot.lane.b32.xlu0 %v1213, 8
  %v1633 = vpop.permute.xlu0 %1632
  %1634 = vrot.lane.b32.xlu0 %v1216, 8
  %v1635 = vpop.permute.xlu0 %1634
  %1636 = vrot.lane.b32.xlu0 %v1329, 8
  %v1637 = vpop.permute.xlu0 %1636
  %1638 = vrot.lane.b32.xlu0 %v1332, 8
  %v1639 = vpop.permute.xlu0 %1638
  %1640 = vrot.lane.b32.xlu0 %v1445, 8
  %v1641 = vpop.permute.xlu0 %1640
  %1642 = vrot.lane.b32.xlu0 %v1448, 8
  %v1643 = vpop.permute.xlu0 %1642
  %1644 = vrot.lane.b32.xlu0 %v1561, 8
  %v1645 = vpop.permute.xlu0 %1644
  %1646 = vrot.lane.b32.xlu0 %v1564, 8
  %v1647 = vpop.permute.xlu0 %1646
  %1664 = vrot.lane.b32.xlu0 %v1242, 16
  %v1665 = vpop.permute.xlu0 %1664
  %1666 = vrot.lane.b32.xlu0 %v1245, 16
  %v1667 = vpop.permute.xlu0 %1666
  %1668 = vrot.lane.b32.xlu0 %v1358, 16
  %v1669 = vpop.permute.xlu0 %1668
  %1670 = vrot.lane.b32.xlu0 %v1361, 16
  %v1671 = vpop.permute.xlu0 %1670
  %1672 = vrot.lane.b32.xlu0 %v1474, 16
  %v1673 = vpop.permute.xlu0 %1672
  %1674 = vrot.lane.b32.xlu0 %v1477, 16
  %v1675 = vpop.permute.xlu0 %1674
  %1676 = vrot.lane.b32.xlu0 %v1590, 16
  %v1677 = vpop.permute.xlu0 %1676
  %1678 = vrot.lane.b32.xlu0 %v1593, 16
  %v1679 = vpop.permute.xlu0 %1678
  %1696 = vrot.lane.b32.xlu0 %v1271, 24
  %v1697 = vpop.permute.xlu0 %1696
  %1698 = vrot.lane.b32.xlu0 %v1274, 24
  %v1699 = vpop.permute.xlu0 %1698
  %1700 = vrot.lane.b32.xlu0 %v1387, 24
  %v1701 = vpop.permute.xlu0 %1700
  %1702 = vrot.lane.b32.xlu0 %v1390, 24
  %v1703 = vpop.permute.xlu0 %1702
  %1704 = vrot.lane.b32.xlu0 %v1503, 24
  %v1705 = vpop.permute.xlu0 %1704
  %1706 = vrot.lane.b32.xlu0 %v1506, 24
  %v1707 = vpop.permute.xlu0 %1706
  %1708 = vrot.lane.b32.xlu0 %v1619, 24
  %v1709 = vpop.permute.xlu0 %1708
  %1710 = vrot.lane.b32.xlu0 %v1622, 24
  %v1711 = vpop.permute.xlu0 %1710
  %v1720 = vsel %vm35, %v1184, %v1633
  %v1721 = vsel %vm35, %v1187, %v1635
  %v1722 = vsel %vm35, %v1300, %v1637
  %v1723 = vsel %vm35, %v1303, %v1639
  %v1724 = vsel %vm35, %v1416, %v1641
  %v1725 = vsel %vm35, %v1419, %v1643
  %v1726 = vsel %vm35, %v1532, %v1645
  %v1727 = vsel %vm35, %v1535, %v1647
  %v1728 = vsel %vm735, %v1720, %v1665
  %v1729 = vsel %vm735, %v1721, %v1667
  %v1730 = vsel %vm735, %v1722, %v1669
  %v1731 = vsel %vm735, %v1723, %v1671
  %v1732 = vsel %vm735, %v1724, %v1673
  %v1733 = vsel %vm735, %v1725, %v1675
  %v1734 = vsel %vm735, %v1726, %v1677
  %v1735 = vsel %vm735, %v1727, %v1679
  %vm1736 = vcmask 195584
  %v1737 = vsel %vm1736, %v1728, %v1697
  %v1738 = vsel %vm1736, %v1729, %v1699
  %v1739 = vsel %vm1736, %v1730, %v1701
  %v1740 = vsel %vm1736, %v1731, %v1703
  %v1741 = vsel %vm1736, %v1732, %v1705
  %v1742 = vsel %vm1736, %v1733, %v1707
  %v1743 = vsel %vm1736, %v1734, %v1709
  %v1744 = vsel %vm1736, %v1735, %v1711
  %v1745 = vperm.slane %v21, 0
  %v1746 = vadd.f32 %v1737, %v1745
  %v1747 = vadd.f32 %v1738, %v1745
  %v1748 = vadd.f32 %v1739, %v1745
  %v1749 = vadd.f32 %v1740, %v1745
  %v1750 = vadd.f32 %v1741, %v1745
  %v1751 = vadd.f32 %v1742, %v1745
  %v1752 = vadd.f32 %v1743, %v1745
  %v1753 = vadd.f32 %v1744, %v1745
  %v1754 = vmax.f32 %v1746, 0.0
  %v1755 = vmax.f32 %v1747, 0.0
  %v1756 = vmax.f32 %v1748, 0.0
  %v1757 = vmax.f32 %v1749, 0.0
  %v1758 = vmax.f32 %v1750, 0.0
  %v1759 = vmax.f32 %v1751, 0.0
  %v1760 = vmax.f32 %v1752, 0.0
  %v1761 = vmax.f32 %v1753, 0.0
  %v1762 = vperm.slane %v26, 0
  %v1764 = vsel %vm105, %v1754, 0
  %v1767 = vsel %vm105, %v1755, 0
  %v1770 = vsel %vm105, %v1756, 0
  %v1773 = vsel %vm105, %v1757, 0
  %v1776 = vsel %vm105, %v1758, 0
  %v1779 = vsel %vm105, %v1759, 0
  %v1782 = vsel %vm105, %v1760, 0
  %v1785 = vsel %vm105, %v1761, 0
  %1787 = vmatpush.msra.mxu0 0.0
  %1788 = vmatpush.msra.mxu0 0.0
  %1789 = vmatpush.msra.mxu0 0.0
  %1790 = vmatpush.msra.mxu0 0.0
  %1791 = vmatpush.msra.mxu0 0.0
  %1792 = vmatpush.msra.mxu0 0.0
  %1793 = vmatpush.msra.mxu0 0.0
  %1794 = vmatpush.msra.mxu0 0.0
  %1795 = vmatpush.msra.mxu0 0.0
  %1796 = vmatpush.msra.mxu0 0.0
  %1797 = vmatpush.msra.mxu0 0.0
  %1798 = vmatpush.msra.mxu0 0.0
  %1799 = vmatpush.msra.mxu0 %v25
  %1800 = vmatpush.msra.mxu0 %v24
  %1801 = vmatpush.msra.mxu0 %v23
  %1802 = vmatpush.msra.mxu0 %v22
  %1803 = vmatmul.f32.gmra.mxu0 %v1764
  %v1804 = vpop.f32.mrf.mxu0
  %v1805 = vadd.f32 %v1762, %v1804
  %1806 = vmatmul.f32.gmra.mxu0 %v1767
  %v1807 = vpop.f32.mrf.mxu0
  %v1808 = vadd.f32 %v1762, %v1807
  %1809 = vmatmul.f32.gmra.mxu0 %v1770
  %v1810 = vpop.f32.mrf.mxu0
  %v1811 = vadd.f32 %v1762, %v1810
  %1812 = vmatmul.f32.gmra.mxu0 %v1773
  %v1813 = vpop.f32.mrf.mxu0
  %v1814 = vadd.f32 %v1762, %v1813
  %1815 = vmatmul.f32.gmra.mxu0 %v1776
  %v1816 = vpop.f32.mrf.mxu0
  %v1817 = vadd.f32 %v1762, %v1816
  %1818 = vmatmul.f32.gmra.mxu0 %v1779
  %v1819 = vpop.f32.mrf.mxu0
  %v1820 = vadd.f32 %v1762, %v1819
  %1821 = vmatmul.f32.gmra.mxu0 %v1782
  %v1822 = vpop.f32.mrf.mxu0
  %v1823 = vadd.f32 %v1762, %v1822
  %1824 = vmatmul.f32.gmra.mxu0 %v1785
  %v1825 = vpop.f32.mrf.mxu0
  %v1826 = vadd.f32 %v1762, %v1825
  %1827 = vdwg.mxu0
  %1828 = vst.msk [vmem:[%s5] sm:$0xff] %vm35, %v1805
  %1829 = vst.msk [vmem:[%s5 + $0x8] sm:$0xff] %vm35, %v1808
  %1830 = vst.msk [vmem:[%s5 + $0x10] sm:$0xff] %vm35, %v1811
  %1831 = vst.msk [vmem:[%s5 + $0x18] sm:$0xff] %vm35, %v1814
  %1832 = vst.msk [vmem:[%s5 + $0x20] sm:$0xff] %vm35, %v1817
  %1833 = vst.msk [vmem:[%s5 + $0x28] sm:$0xff] %vm35, %v1820
  %1834 = vst.msk [vmem:[%s5 + $0x30] sm:$0xff] %vm35, %v1823
  %1835 = vst.msk [vmem:[%s5 + $0x38] sm:$0xff] %vm35, %v1826
  // Predicated region
  $region22: #{gat_forward.1} parent=0 // pred_check
    _
  $region23: #{gat_forward.1} parent=0 // pred_check_branch
    %1837 = sbr.rel (0) target = $region25
  $region24: #{gat_forward.1} parent=0 // pred_region
    _
  $region25: #{gat_forward.1} parent=0 // pred_fallthru
    _
  // Predicated region
  $region26: #{gat_forward.1} parent=0 // pred_check
    _
  $region27: #{gat_forward.1} parent=0 // pred_check_branch
    %1839 = sbr.rel (0) target = $region29
  $region28: #{gat_forward.1} parent=0 // pred_region
    _
  $region29: #{gat_forward.1} parent=0 // pred_fallthru
    _

</llo_original>
